<compile_context>
chip_gen: v6e
topology: v6e:2x2x1
jax: 0.10.0
libtpu: 0.0.40
codegen_flags: <defaults>
</compile_context>

<pallas_src>
import jax
import jax.numpy as jnp
from jax.experimental import pallas as pl
from jax.experimental.pallas import tpu as pltpu

EPS = 1e-5  # nn.LayerNorm default


def _layernorm(x, gamma, beta):
    mu = jnp.mean(x, axis=-1, keepdims=True)
    var = jnp.mean(jnp.square(x - mu), axis=-1, keepdims=True)
    return (x - mu) * jax.lax.rsqrt(var + EPS) * gamma + beta


def _vstack(pieces):
    return pieces[0] if len(pieces) == 1 else jnp.concatenate(pieces, axis=0)


# --------------------------------- kernel -----------------------------------
def gcn_module_kernel(lane_ref, adj_ref, wc_ref, bc_ref, wo_ref, bo_ref,
                      gn_ref, mn_ref, out_ref):
    """All GCN layers for one batch tile.

    lane_ref : (bt, N, H)
    adj_ref  : (bt, N, 6N)  = [I | nbr | pred | succ | pred2 | succ2] per batch
    wc_ref   : (L, H, 6H)   = [W.T | W_nbr.T | W_pred.T | W_succ.T | W_pred_2.T | W_succ_2.T]
    bc_ref   : (L, H)         sum of the six corresponding biases
    wo_ref   : (L, H, H)      output.weight.T
    bo_ref   : (L, H)
    gn_ref   : (L, 2, H)      block LayerNorm [gamma, beta] (shared norm1/norm2, as in PyTorch)
    mn_ref   : (2, H)         GCNModule LayerNorm [gamma, beta]
    """
    f32 = jnp.float32
    bt, N, H = lane_ref.shape
    L = wc_ref.shape[0]

    # Flatten the batch tile into rows once; x stays resident across all layers.
    x = _vstack([lane_ref[b] for b in range(bt)])          # (bt*N, H)

    # Layer-invariant loads, hoisted out of the layer loop.
    adj = [adj_ref[b] for b in range(bt)]                   # each (N, 6N)
    mn = mn_ref[...]
    mn_g, mn_b = mn[0], mn[1]

    for l in range(L):                                      # L static -> unrolled
        wc = wc_ref[l]                                      # (H, 6H)
        bc = bc_ref[l]                                      # (H,)
        wo = wo_ref[l]                                      # (H, H)
        bo = bo_ref[l]                                      # (H,)
        gn = gn_ref[l]                                      # (2, H)
        g_g, g_b = gn[0], gn[1]

        # One MXU matmul for all six linear projections of every row of the
        # batch tile: proj[:, i*H:(i+1)*H] = x @ W_i.T  (lane-dense 6H output).
        proj = jnp.dot(x, wc, preferred_element_type=f32)   # (bt*N, 6H)

        # Per batch element, a single (N, 6N) @ (6N, H) matmul performs the
        # I/nbr/pred/succ/pred2/succ2 aggregation AND the sum over the six
        # projections (pred2/succ2 were hoisted to the wrapper).
        rows = []
        for b in range(bt):
            pb = proj[b * N:(b + 1) * N]                                       # (N, 6H)
            pb_stack = _vstack([pb[:, i * H:(i + 1) * H] for i in range(6)])   # (6N, H)
            rows.append(jnp.dot(adj[b], pb_stack, preferred_element_type=f32))  # (N, H)
        nxt = _vstack(rows) + bc                            # (bt*N, H)

        h = jax.nn.relu(_layernorm(nxt, g_g, g_b))
        out = jnp.dot(h, wo, preferred_element_type=f32) + bo
        out = jax.nn.relu(_layernorm(out, g_g, g_b)) + x    # residual
        out = jax.nn.relu(out)
        x = _layernorm(out, mn_g, mn_b)                     # module-level LayerNorm

    for b in range(bt):
        out_ref[b] = x[b * N:(b + 1) * N].astype(out_ref.dtype)


# --------------------------------- wrapper ----------------------------------
def build_adjacency_stack(nbr, pred, succ):
    """Layer-invariant adjacency stack [I | nbr | pred | succ | min(pred@pred,1) | min(succ@succ,1)]."""
    B, N, _ = nbr.shape
    pred2 = jnp.minimum(jnp.matmul(pred, pred), 1.0)        # == where(x > 1, 1, x)
    succ2 = jnp.minimum(jnp.matmul(succ, succ), 1.0)
    eye = jnp.broadcast_to(jnp.eye(N, dtype=nbr.dtype), (B, N, N))
    return jnp.concatenate([eye, nbr, pred, succ, pred2, succ2], axis=2)  # (B, N, 6N)


def pack_params(layers, mnorm):
    """Stack per-layer params into the fused-kernel layout."""
    wc = jnp.stack([jnp.concatenate([ly["w_t"][i] for i in range(6)], axis=1)
                    for ly in layers])                               # (L, H, 6H)
    bc = jnp.stack([jnp.sum(ly["b"][:6], axis=0) for ly in layers])  # (L, H)
    wo = jnp.stack([ly["w_t"][6] for ly in layers])                  # (L, H, H)
    bo = jnp.stack([ly["b"][6] for ly in layers])                    # (L, H)
    gn = jnp.stack([ly["gnorm"] for ly in layers])                   # (L, 2, H)
    return dict(wc=wc, bc=bc, wo=wo, bo=bo, gn=gn, mn=mnorm)


def gcn_module_pallas(lane_feat, adj6, params, *, batch_tile=None):
    B, N, H = lane_feat.shape
    assert adj6.shape == (B, N, 6 * N)

    if batch_tile is None:
        # Split the batch over (at most) two "parallel" grid steps so both
        # TensorCores get work on v7x; on single-TC v5e/v6e the extra step is cheap.
        batch_tile = B // 2 if (B >= 2 and B % 2 == 0) else B
    assert B % batch_tile == 0
    bt = batch_tile
    grid = (B // bt,)

    def _rep(shape):  # replicated (parameter) spec: same block every grid step
        nd = len(shape)
        return pl.BlockSpec(shape, lambda i, _nd=nd: (0,) * _nd)

    feat_spec = pl.BlockSpec((bt, N, H), lambda i: (i, 0, 0))
    adj_spec = pl.BlockSpec((bt, N, 6 * N), lambda i: (i, 0, 0))

    # NOTE: all L layers' weights stay resident in VMEM (~7*L*H*H floats). For
    # large H / deep stacks (esp. v7x's 64 MiB VMEM) stream them per layer
    # instead (extra grid axis or pltpu.emit_pipeline).
    return pl.pallas_call(
        gcn_module_kernel,
        out_shape=jax.ShapeDtypeStruct((B, N, H), lane_feat.dtype),
        grid=grid,
        in_specs=[feat_spec, adj_spec,
                  _rep(params["wc"].shape), _rep(params["bc"].shape),
                  _rep(params["wo"].shape), _rep(params["bo"].shape),
                  _rep(params["gn"].shape), _rep(params["mn"].shape)],
        out_specs=feat_spec,
        compiler_params=pltpu.CompilerParams(
            dimension_semantics=("parallel",)),
    )(lane_feat, adj6, params["wc"], params["bc"], params["wo"],
      params["bo"], params["gn"], params["mn"])


@jax.jit
def gcn_module_forward(lane_feat, nbr, pred, succ, params):
    adj6 = build_adjacency_stack(nbr, pred, succ)
    return gcn_module_pallas(lane_feat, adj6, params)


# --------------------------- parameter construction -------------------------
def init_params(key, num_layers, hidden_size):
    """Deterministic synthetic parameters (xavier-ish weights, small biases)."""
    layers = []
    for _ in range(num_layers):
        ws, bs = [], []
        for _ in range(7):  # W, W_nbr, W_pred, W_succ, W_pred_2, W_succ_2, output
            key, k1, k2 = jax.random.split(key, 3)
            limit = (6.0 / (hidden_size + hidden_size)) ** 0.5
            w = jax.random.uniform(k1, (hidden_size, hidden_size),
                                   jnp.float32, -limit, limit)
            bound = 1.0 / (hidden_size ** 0.5)
            bias = jax.random.uniform(k2, (hidden_size,),
                                      jnp.float32, -bound, bound)
            ws.append(w.T)   # pre-transpose: kernel does x @ W_t + b
            bs.append(bias)
        gnorm = jnp.stack([jnp.ones((hidden_size,), jnp.float32),
                           jnp.zeros((hidden_size,), jnp.float32)])
        layers.append(dict(w_t=jnp.stack(ws), b=jnp.stack(bs), gnorm=gnorm))
    mnorm = jnp.stack([jnp.ones((hidden_size,), jnp.float32),
                       jnp.zeros((hidden_size,), jnp.float32)])
    return layers, mnorm


# ---------------- pure-JAX reference (for correctness check) ----------------
def gcn_module_ref(lane_feat, nbr, pred, succ, layers, mnorm):
    f32 = jnp.float32
    mm = lambda a, b_: jnp.einsum("bij,bjk->bik", a, b_, preferred_element_type=f32)
    for layer in layers:
        w_t, b, gnorm = layer["w_t"], layer["b"], layer["gnorm"]
        lin = lambda i, v: jnp.einsum("bnh,hk->bnk", v, w_t[i],
                                      preferred_element_type=f32) + b[i]
        pred2 = jnp.where(mm(pred, pred) > 1.0, 1.0, mm(pred, pred))
        succ2 = jnp.where(mm(succ, succ) > 1.0, 1.0, mm(succ, succ))
        next_feat = (lin(0, lane_feat) + lin(1, mm(nbr, lane_feat))
                     + lin(2, mm(pred, lane_feat)) + lin(3, mm(succ, lane_feat))
                     + lin(4, mm(pred2, lane_feat)) + lin(5, mm(succ2, lane_feat)))
        out = lin(6, jax.nn.relu(_layernorm(next_feat, gnorm[0], gnorm[1])))
        out = jax.nn.relu(_layernorm(out, gnorm[0], gnorm[1])) + lane_feat
        out = jax.nn.relu(out)
        lane_feat = _layernorm(out, mnorm[0], mnorm[1])
    return lane_feat


if __name__ == "__main__":
    B, N, H = 2, 16, 32          # batch, num_lanes, hidden_size
    NUM_LAYERS = 2

    key = jax.random.PRNGKey(0)
    key, kf, kn, kp, ks, kparam = jax.random.split(key, 6)

    lane_feat = jax.random.normal(kf, (B, N, H), jnp.float32)
    nbr = (jax.random.uniform(kn, (B, N, N)) < 0.3).astype(jnp.float32)
    pred = (jax.random.uniform(kp, (B, N, N)) < 0.3).astype(jnp.float32)
    succ = (jax.random.uniform(ks, (B, N, N)) < 0.3).astype(jnp.float32)
    # The `mask` argument of the PyTorch module is unused in its forward pass.

    layers, mnorm = init_params(kparam, NUM_LAYERS, H)
    params = pack_params(layers, mnorm)

    out = gcn_module_forward(lane_feat, nbr, pred, succ, params)
    out = jax.block_until_ready(out)

    ref = gcn_module_ref(lane_feat, nbr, pred, succ, layers, mnorm)
    assert out.shape == (B, N, H)
    assert bool(jnp.all(jnp.isfinite(out)))
    assert jnp.allclose(out, ref, atol=5e-3, rtol=5e-3), "mismatch vs reference"

    print("KERNEL_OK")
</pallas_src>

<mosaic_0001>
module attributes {stable_mosaic.version = 11 : i64} {
  func.func @gcn_module_kernel(%arg0: i32, %arg1: memref<1x16x32xf32, #tpu.memory_space<vmem>>, %arg2: memref<1x16x96xf32, #tpu.memory_space<vmem>>, %arg3: memref<2x32x192xf32, #tpu.memory_space<vmem>>, %arg4: memref<2x32xf32, #tpu.memory_space<vmem>>, %arg5: memref<2x32x32xf32, #tpu.memory_space<vmem>>, %arg6: memref<2x32xf32, #tpu.memory_space<vmem>>, %arg7: memref<2x2x32xf32, #tpu.memory_space<vmem>>, %arg8: memref<2x32xf32, #tpu.memory_space<vmem>>, %arg9: memref<1x16x32xf32, #tpu.memory_space<vmem>>) attributes {dimension_semantics = [#tpu.dimension_semantics<parallel>], iteration_bounds = array<i64: 2>, scalar_prefetch = 0 : i64, scratch_operands = 0 : i64, tpu.core_type = #tpu.core_type<tc>, window_params = [{transform_indices = @transform_0, window_bounds = array<i64: 1, 16, 32>}, {transform_indices = @transform_1, window_bounds = array<i64: 1, 16, 96>}, {pipeline_mode = #tpu.pipeline_mode<synchronous>, transform_indices = @transform_2, window_bounds = array<i64: 2, 32, 192>}, {pipeline_mode = #tpu.pipeline_mode<synchronous>, transform_indices = @transform_3, window_bounds = array<i64: 2, 32>}, {pipeline_mode = #tpu.pipeline_mode<synchronous>, transform_indices = @transform_4, window_bounds = array<i64: 2, 32, 32>}, {pipeline_mode = #tpu.pipeline_mode<synchronous>, transform_indices = @transform_5, window_bounds = array<i64: 2, 32>}, {pipeline_mode = #tpu.pipeline_mode<synchronous>, transform_indices = @transform_6, window_bounds = array<i64: 2, 2, 32>}, {pipeline_mode = #tpu.pipeline_mode<synchronous>, transform_indices = @transform_7, window_bounds = array<i64: 2, 32>}, {transform_indices = @transform_8, window_bounds = array<i64: 1, 16, 32>}]} {
    %c0 = arith.constant 0 : index
    %c0_0 = arith.constant 0 : index
    %c0_1 = arith.constant 0 : index
    %0 = vector.load %arg1[%c0, %c0_0, %c0_1] : memref<1x16x32xf32, #tpu.memory_space<vmem>>, vector<1x16x32xf32>
    %1 = vector.shape_cast %0 : vector<1x16x32xf32> to vector<16x32xf32>
    %c0_2 = arith.constant 0 : index
    %c0_3 = arith.constant 0 : index
    %c0_4 = arith.constant 0 : index
    %2 = vector.load %arg2[%c0_2, %c0_3, %c0_4] : memref<1x16x96xf32, #tpu.memory_space<vmem>>, vector<1x16x96xf32>
    %3 = vector.shape_cast %2 : vector<1x16x96xf32> to vector<16x96xf32>
    %c0_5 = arith.constant 0 : index
    %c0_6 = arith.constant 0 : index
    %4 = vector.load %arg8[%c0_5, %c0_6] : memref<2x32xf32, #tpu.memory_space<vmem>>, vector<2x32xf32>
    %5 = vector.extract_strided_slice %4 {offsets = [0, 0], sizes = [1, 32], strides = [1, 1]} : vector<2x32xf32> to vector<1x32xf32>
    %6 = vector.shape_cast %5 : vector<1x32xf32> to vector<32xf32>
    %7 = vector.extract_strided_slice %4 {offsets = [1, 0], sizes = [1, 32], strides = [1, 1]} : vector<2x32xf32> to vector<1x32xf32>
    %8 = vector.shape_cast %7 : vector<1x32xf32> to vector<32xf32>
    %c0_7 = arith.constant 0 : index
    %c0_8 = arith.constant 0 : index
    %c0_9 = arith.constant 0 : index
    %9 = vector.load %arg3[%c0_7, %c0_8, %c0_9] : memref<2x32x192xf32, #tpu.memory_space<vmem>>, vector<1x32x192xf32>
    %10 = vector.shape_cast %9 : vector<1x32x192xf32> to vector<32x192xf32>
    %c0_10 = arith.constant 0 : index
    %c0_11 = arith.constant 0 : index
    %11 = vector.load %arg4[%c0_10, %c0_11] : memref<2x32xf32, #tpu.memory_space<vmem>>, vector<1x32xf32>
    %12 = vector.shape_cast %11 : vector<1x32xf32> to vector<32xf32>
    %c0_12 = arith.constant 0 : index
    %c0_13 = arith.constant 0 : index
    %c0_14 = arith.constant 0 : index
    %13 = vector.load %arg5[%c0_12, %c0_13, %c0_14] : memref<2x32x32xf32, #tpu.memory_space<vmem>>, vector<1x32x32xf32>
    %14 = vector.shape_cast %13 : vector<1x32x32xf32> to vector<32x32xf32>
    %c0_15 = arith.constant 0 : index
    %c0_16 = arith.constant 0 : index
    %15 = vector.load %arg6[%c0_15, %c0_16] : memref<2x32xf32, #tpu.memory_space<vmem>>, vector<1x32xf32>
    %16 = vector.shape_cast %15 : vector<1x32xf32> to vector<32xf32>
    %c0_17 = arith.constant 0 : index
    %c0_18 = arith.constant 0 : index
    %c0_19 = arith.constant 0 : index
    %17 = vector.load %arg7[%c0_17, %c0_18, %c0_19] : memref<2x2x32xf32, #tpu.memory_space<vmem>>, vector<1x2x32xf32>
    %18 = vector.shape_cast %17 : vector<1x2x32xf32> to vector<2x32xf32>
    %19 = vector.extract_strided_slice %18 {offsets = [0, 0], sizes = [1, 32], strides = [1, 1]} : vector<2x32xf32> to vector<1x32xf32>
    %20 = vector.shape_cast %19 : vector<1x32xf32> to vector<32xf32>
    %21 = vector.extract_strided_slice %18 {offsets = [1, 0], sizes = [1, 32], strides = [1, 1]} : vector<2x32xf32> to vector<1x32xf32>
    %22 = vector.shape_cast %21 : vector<1x32xf32> to vector<32xf32>
    %cst = arith.constant dense<0.000000e+00> : vector<16x192xf32>
    %23 = tpu.matmul %1, %10, %cst {dimension_numbers = #tpu.dot_dimension_numbers<[1], [0], [0], [1], [0, 0, 1, 1], [], []>} : vector<16x32xf32>, vector<32x192xf32>, vector<16x192xf32> -> vector<16x192xf32>
    %24 = vector.extract_strided_slice %23 {offsets = [0, 0], sizes = [16, 32], strides = [1, 1]} : vector<16x192xf32> to vector<16x32xf32>
    %25 = vector.extract_strided_slice %23 {offsets = [0, 32], sizes = [16, 32], strides = [1, 1]} : vector<16x192xf32> to vector<16x32xf32>
    %26 = vector.extract_strided_slice %23 {offsets = [0, 64], sizes = [16, 32], strides = [1, 1]} : vector<16x192xf32> to vector<16x32xf32>
    %27 = vector.extract_strided_slice %23 {offsets = [0, 96], sizes = [16, 32], strides = [1, 1]} : vector<16x192xf32> to vector<16x32xf32>
    %28 = vector.extract_strided_slice %23 {offsets = [0, 128], sizes = [16, 32], strides = [1, 1]} : vector<16x192xf32> to vector<16x32xf32>
    %29 = vector.extract_strided_slice %23 {offsets = [0, 160], sizes = [16, 32], strides = [1, 1]} : vector<16x192xf32> to vector<16x32xf32>
    %30 = tpu.concatenate %24, %25, %26, %27, %28, %29 in 0 : vector<16x32xf32>, vector<16x32xf32>, vector<16x32xf32>, vector<16x32xf32>, vector<16x32xf32>, vector<16x32xf32> -> vector<96x32xf32>
    %cst_20 = arith.constant dense<0.000000e+00> : vector<16x32xf32>
    %31 = tpu.matmul %3, %30, %cst_20 {dimension_numbers = #tpu.dot_dimension_numbers<[1], [0], [0], [1], [0, 0, 1, 1], [], []>} : vector<16x96xf32>, vector<96x32xf32>, vector<16x32xf32> -> vector<16x32xf32>
    %32 = vector.shape_cast %12 : vector<32xf32> to vector<1x32xf32>
    %33 = vector.broadcast %32 : vector<1x32xf32> to vector<16x32xf32>
    %34 = arith.addf %31, %33 : vector<16x32xf32>
    %cst_21 = arith.constant dense<0.000000e+00> : vector<16xf32>
    %35 = vector.multi_reduction <add>, %34, %cst_21 [1] : vector<16x32xf32> to vector<16xf32>
    %36 = vector.shape_cast %35 : vector<16xf32> to vector<16x1xf32>
    %cst_22 = arith.constant 3.200000e+01 : f32
    %37 = vector.broadcast %cst_22 : f32 to vector<16x1xf32>
    %38 = arith.divf %36, %37 : vector<16x1xf32>
    %39 = vector.broadcast %38 : vector<16x1xf32> to vector<16x32xf32>
    %40 = arith.subf %34, %39 : vector<16x32xf32>
    %41 = arith.mulf %40, %40 : vector<16x32xf32>
    %cst_23 = arith.constant dense<0.000000e+00> : vector<16xf32>
    %42 = vector.multi_reduction <add>, %41, %cst_23 [1] : vector<16x32xf32> to vector<16xf32>
    %43 = vector.shape_cast %42 : vector<16xf32> to vector<16x1xf32>
    %cst_24 = arith.constant 3.200000e+01 : f32
    %44 = vector.broadcast %cst_24 : f32 to vector<16x1xf32>
    %45 = arith.divf %43, %44 : vector<16x1xf32>
    %46 = vector.broadcast %38 : vector<16x1xf32> to vector<16x32xf32>
    %47 = arith.subf %34, %46 : vector<16x32xf32>
    %cst_25 = arith.constant 9.99999974E-6 : f32
    %48 = vector.broadcast %cst_25 : f32 to vector<16x1xf32>
    %49 = arith.addf %45, %48 : vector<16x1xf32>
    %50 = math.rsqrt %49 : vector<16x1xf32>
    %51 = vector.broadcast %50 : vector<16x1xf32> to vector<16x32xf32>
    %52 = arith.mulf %47, %51 : vector<16x32xf32>
    %53 = vector.shape_cast %20 : vector<32xf32> to vector<1x32xf32>
    %54 = vector.broadcast %53 : vector<1x32xf32> to vector<16x32xf32>
    %55 = arith.mulf %52, %54 : vector<16x32xf32>
    %56 = vector.shape_cast %22 : vector<32xf32> to vector<1x32xf32>
    %57 = vector.broadcast %56 : vector<1x32xf32> to vector<16x32xf32>
    %58 = arith.addf %55, %57 : vector<16x32xf32>
    %cst_26 = arith.constant 0.000000e+00 : f32
    %59 = vector.broadcast %cst_26 : f32 to vector<16x32xf32>
    %60 = arith.maximumf %58, %59 : vector<16x32xf32>
    %cst_27 = arith.constant dense<0.000000e+00> : vector<16x32xf32>
    %61 = tpu.matmul %60, %14, %cst_27 {dimension_numbers = #tpu.dot_dimension_numbers<[1], [0], [0], [1], [0, 0, 1, 1], [], []>} : vector<16x32xf32>, vector<32x32xf32>, vector<16x32xf32> -> vector<16x32xf32>
    %62 = vector.shape_cast %16 : vector<32xf32> to vector<1x32xf32>
    %63 = vector.broadcast %62 : vector<1x32xf32> to vector<16x32xf32>
    %64 = arith.addf %61, %63 : vector<16x32xf32>
    %cst_28 = arith.constant dense<0.000000e+00> : vector<16xf32>
    %65 = vector.multi_reduction <add>, %64, %cst_28 [1] : vector<16x32xf32> to vector<16xf32>
    %66 = vector.shape_cast %65 : vector<16xf32> to vector<16x1xf32>
    %cst_29 = arith.constant 3.200000e+01 : f32
    %67 = vector.broadcast %cst_29 : f32 to vector<16x1xf32>
    %68 = arith.divf %66, %67 : vector<16x1xf32>
    %69 = vector.broadcast %68 : vector<16x1xf32> to vector<16x32xf32>
    %70 = arith.subf %64, %69 : vector<16x32xf32>
    %71 = arith.mulf %70, %70 : vector<16x32xf32>
    %cst_30 = arith.constant dense<0.000000e+00> : vector<16xf32>
    %72 = vector.multi_reduction <add>, %71, %cst_30 [1] : vector<16x32xf32> to vector<16xf32>
    %73 = vector.shape_cast %72 : vector<16xf32> to vector<16x1xf32>
    %cst_31 = arith.constant 3.200000e+01 : f32
    %74 = vector.broadcast %cst_31 : f32 to vector<16x1xf32>
    %75 = arith.divf %73, %74 : vector<16x1xf32>
    %76 = vector.broadcast %68 : vector<16x1xf32> to vector<16x32xf32>
    %77 = arith.subf %64, %76 : vector<16x32xf32>
    %cst_32 = arith.constant 9.99999974E-6 : f32
    %78 = vector.broadcast %cst_32 : f32 to vector<16x1xf32>
    %79 = arith.addf %75, %78 : vector<16x1xf32>
    %80 = math.rsqrt %79 : vector<16x1xf32>
    %81 = vector.broadcast %80 : vector<16x1xf32> to vector<16x32xf32>
    %82 = arith.mulf %77, %81 : vector<16x32xf32>
    %83 = vector.shape_cast %20 : vector<32xf32> to vector<1x32xf32>
    %84 = vector.broadcast %83 : vector<1x32xf32> to vector<16x32xf32>
    %85 = arith.mulf %82, %84 : vector<16x32xf32>
    %86 = vector.shape_cast %22 : vector<32xf32> to vector<1x32xf32>
    %87 = vector.broadcast %86 : vector<1x32xf32> to vector<16x32xf32>
    %88 = arith.addf %85, %87 : vector<16x32xf32>
    %cst_33 = arith.constant 0.000000e+00 : f32
    %89 = vector.broadcast %cst_33 : f32 to vector<16x32xf32>
    %90 = arith.maximumf %88, %89 : vector<16x32xf32>
    %91 = arith.addf %90, %1 : vector<16x32xf32>
    %cst_34 = arith.constant 0.000000e+00 : f32
    %92 = vector.broadcast %cst_34 : f32 to vector<16x32xf32>
    %93 = arith.maximumf %91, %92 : vector<16x32xf32>
    %cst_35 = arith.constant dense<0.000000e+00> : vector<16xf32>
    %94 = vector.multi_reduction <add>, %93, %cst_35 [1] : vector<16x32xf32> to vector<16xf32>
    %95 = vector.shape_cast %94 : vector<16xf32> to vector<16x1xf32>
    %cst_36 = arith.constant 3.200000e+01 : f32
    %96 = vector.broadcast %cst_36 : f32 to vector<16x1xf32>
    %97 = arith.divf %95, %96 : vector<16x1xf32>
    %98 = vector.broadcast %97 : vector<16x1xf32> to vector<16x32xf32>
    %99 = arith.subf %93, %98 : vector<16x32xf32>
    %100 = arith.mulf %99, %99 : vector<16x32xf32>
    %cst_37 = arith.constant dense<0.000000e+00> : vector<16xf32>
    %101 = vector.multi_reduction <add>, %100, %cst_37 [1] : vector<16x32xf32> to vector<16xf32>
    %102 = vector.shape_cast %101 : vector<16xf32> to vector<16x1xf32>
    %cst_38 = arith.constant 3.200000e+01 : f32
    %103 = vector.broadcast %cst_38 : f32 to vector<16x1xf32>
    %104 = arith.divf %102, %103 : vector<16x1xf32>
    %105 = vector.broadcast %97 : vector<16x1xf32> to vector<16x32xf32>
    %106 = arith.subf %93, %105 : vector<16x32xf32>
    %cst_39 = arith.constant 9.99999974E-6 : f32
    %107 = vector.broadcast %cst_39 : f32 to vector<16x1xf32>
    %108 = arith.addf %104, %107 : vector<16x1xf32>
    %109 = math.rsqrt %108 : vector<16x1xf32>
    %110 = vector.broadcast %109 : vector<16x1xf32> to vector<16x32xf32>
    %111 = arith.mulf %106, %110 : vector<16x32xf32>
    %112 = vector.shape_cast %6 : vector<32xf32> to vector<1x32xf32>
    %113 = vector.broadcast %112 : vector<1x32xf32> to vector<16x32xf32>
    %114 = arith.mulf %111, %113 : vector<16x32xf32>
    %115 = vector.shape_cast %8 : vector<32xf32> to vector<1x32xf32>
    %116 = vector.broadcast %115 : vector<1x32xf32> to vector<16x32xf32>
    %117 = arith.addf %114, %116 : vector<16x32xf32>
    %c1 = arith.constant 1 : index
    %c0_40 = arith.constant 0 : index
    %c0_41 = arith.constant 0 : index
    %118 = vector.load %arg3[%c1, %c0_40, %c0_41] : memref<2x32x192xf32, #tpu.memory_space<vmem>>, vector<1x32x192xf32>
    %119 = vector.shape_cast %118 : vector<1x32x192xf32> to vector<32x192xf32>
    %c1_42 = arith.constant 1 : index
    %c0_43 = arith.constant 0 : index
    %120 = vector.load %arg4[%c1_42, %c0_43] : memref<2x32xf32, #tpu.memory_space<vmem>>, vector<1x32xf32>
    %121 = vector.shape_cast %120 : vector<1x32xf32> to vector<32xf32>
    %c1_44 = arith.constant 1 : index
    %c0_45 = arith.constant 0 : index
    %c0_46 = arith.constant 0 : index
    %122 = vector.load %arg5[%c1_44, %c0_45, %c0_46] : memref<2x32x32xf32, #tpu.memory_space<vmem>>, vector<1x32x32xf32>
    %123 = vector.shape_cast %122 : vector<1x32x32xf32> to vector<32x32xf32>
    %c1_47 = arith.constant 1 : index
    %c0_48 = arith.constant 0 : index
    %124 = vector.load %arg6[%c1_47, %c0_48] : memref<2x32xf32, #tpu.memory_space<vmem>>, vector<1x32xf32>
    %125 = vector.shape_cast %124 : vector<1x32xf32> to vector<32xf32>
    %c1_49 = arith.constant 1 : index
    %c0_50 = arith.constant 0 : index
    %c0_51 = arith.constant 0 : index
    %126 = vector.load %arg7[%c1_49, %c0_50, %c0_51] : memref<2x2x32xf32, #tpu.memory_space<vmem>>, vector<1x2x32xf32>
    %127 = vector.shape_cast %126 : vector<1x2x32xf32> to vector<2x32xf32>
    %128 = vector.extract_strided_slice %127 {offsets = [0, 0], sizes = [1, 32], strides = [1, 1]} : vector<2x32xf32> to vector<1x32xf32>
    %129 = vector.shape_cast %128 : vector<1x32xf32> to vector<32xf32>
    %130 = vector.extract_strided_slice %127 {offsets = [1, 0], sizes = [1, 32], strides = [1, 1]} : vector<2x32xf32> to vector<1x32xf32>
    %131 = vector.shape_cast %130 : vector<1x32xf32> to vector<32xf32>
    %cst_52 = arith.constant dense<0.000000e+00> : vector<16x192xf32>
    %132 = tpu.matmul %117, %119, %cst_52 {dimension_numbers = #tpu.dot_dimension_numbers<[1], [0], [0], [1], [0, 0, 1, 1], [], []>} : vector<16x32xf32>, vector<32x192xf32>, vector<16x192xf32> -> vector<16x192xf32>
    %133 = vector.extract_strided_slice %132 {offsets = [0, 0], sizes = [16, 32], strides = [1, 1]} : vector<16x192xf32> to vector<16x32xf32>
    %134 = vector.extract_strided_slice %132 {offsets = [0, 32], sizes = [16, 32], strides = [1, 1]} : vector<16x192xf32> to vector<16x32xf32>
    %135 = vector.extract_strided_slice %132 {offsets = [0, 64], sizes = [16, 32], strides = [1, 1]} : vector<16x192xf32> to vector<16x32xf32>
    %136 = vector.extract_strided_slice %132 {offsets = [0, 96], sizes = [16, 32], strides = [1, 1]} : vector<16x192xf32> to vector<16x32xf32>
    %137 = vector.extract_strided_slice %132 {offsets = [0, 128], sizes = [16, 32], strides = [1, 1]} : vector<16x192xf32> to vector<16x32xf32>
    %138 = vector.extract_strided_slice %132 {offsets = [0, 160], sizes = [16, 32], strides = [1, 1]} : vector<16x192xf32> to vector<16x32xf32>
    %139 = tpu.concatenate %133, %134, %135, %136, %137, %138 in 0 : vector<16x32xf32>, vector<16x32xf32>, vector<16x32xf32>, vector<16x32xf32>, vector<16x32xf32>, vector<16x32xf32> -> vector<96x32xf32>
    %cst_53 = arith.constant dense<0.000000e+00> : vector<16x32xf32>
    %140 = tpu.matmul %3, %139, %cst_53 {dimension_numbers = #tpu.dot_dimension_numbers<[1], [0], [0], [1], [0, 0, 1, 1], [], []>} : vector<16x96xf32>, vector<96x32xf32>, vector<16x32xf32> -> vector<16x32xf32>
    %141 = vector.shape_cast %121 : vector<32xf32> to vector<1x32xf32>
    %142 = vector.broadcast %141 : vector<1x32xf32> to vector<16x32xf32>
    %143 = arith.addf %140, %142 : vector<16x32xf32>
    %cst_54 = arith.constant dense<0.000000e+00> : vector<16xf32>
    %144 = vector.multi_reduction <add>, %143, %cst_54 [1] : vector<16x32xf32> to vector<16xf32>
    %145 = vector.shape_cast %144 : vector<16xf32> to vector<16x1xf32>
    %cst_55 = arith.constant 3.200000e+01 : f32
    %146 = vector.broadcast %cst_55 : f32 to vector<16x1xf32>
    %147 = arith.divf %145, %146 : vector<16x1xf32>
    %148 = vector.broadcast %147 : vector<16x1xf32> to vector<16x32xf32>
    %149 = arith.subf %143, %148 : vector<16x32xf32>
    %150 = arith.mulf %149, %149 : vector<16x32xf32>
    %cst_56 = arith.constant dense<0.000000e+00> : vector<16xf32>
    %151 = vector.multi_reduction <add>, %150, %cst_56 [1] : vector<16x32xf32> to vector<16xf32>
    %152 = vector.shape_cast %151 : vector<16xf32> to vector<16x1xf32>
    %cst_57 = arith.constant 3.200000e+01 : f32
    %153 = vector.broadcast %cst_57 : f32 to vector<16x1xf32>
    %154 = arith.divf %152, %153 : vector<16x1xf32>
    %155 = vector.broadcast %147 : vector<16x1xf32> to vector<16x32xf32>
    %156 = arith.subf %143, %155 : vector<16x32xf32>
    %cst_58 = arith.constant 9.99999974E-6 : f32
    %157 = vector.broadcast %cst_58 : f32 to vector<16x1xf32>
    %158 = arith.addf %154, %157 : vector<16x1xf32>
    %159 = math.rsqrt %158 : vector<16x1xf32>
    %160 = vector.broadcast %159 : vector<16x1xf32> to vector<16x32xf32>
    %161 = arith.mulf %156, %160 : vector<16x32xf32>
    %162 = vector.shape_cast %129 : vector<32xf32> to vector<1x32xf32>
    %163 = vector.broadcast %162 : vector<1x32xf32> to vector<16x32xf32>
    %164 = arith.mulf %161, %163 : vector<16x32xf32>
    %165 = vector.shape_cast %131 : vector<32xf32> to vector<1x32xf32>
    %166 = vector.broadcast %165 : vector<1x32xf32> to vector<16x32xf32>
    %167 = arith.addf %164, %166 : vector<16x32xf32>
    %cst_59 = arith.constant 0.000000e+00 : f32
    %168 = vector.broadcast %cst_59 : f32 to vector<16x32xf32>
    %169 = arith.maximumf %167, %168 : vector<16x32xf32>
    %cst_60 = arith.constant dense<0.000000e+00> : vector<16x32xf32>
    %170 = tpu.matmul %169, %123, %cst_60 {dimension_numbers = #tpu.dot_dimension_numbers<[1], [0], [0], [1], [0, 0, 1, 1], [], []>} : vector<16x32xf32>, vector<32x32xf32>, vector<16x32xf32> -> vector<16x32xf32>
    %171 = vector.shape_cast %125 : vector<32xf32> to vector<1x32xf32>
    %172 = vector.broadcast %171 : vector<1x32xf32> to vector<16x32xf32>
    %173 = arith.addf %170, %172 : vector<16x32xf32>
    %cst_61 = arith.constant dense<0.000000e+00> : vector<16xf32>
    %174 = vector.multi_reduction <add>, %173, %cst_61 [1] : vector<16x32xf32> to vector<16xf32>
    %175 = vector.shape_cast %174 : vector<16xf32> to vector<16x1xf32>
    %cst_62 = arith.constant 3.200000e+01 : f32
    %176 = vector.broadcast %cst_62 : f32 to vector<16x1xf32>
    %177 = arith.divf %175, %176 : vector<16x1xf32>
    %178 = vector.broadcast %177 : vector<16x1xf32> to vector<16x32xf32>
    %179 = arith.subf %173, %178 : vector<16x32xf32>
    %180 = arith.mulf %179, %179 : vector<16x32xf32>
    %cst_63 = arith.constant dense<0.000000e+00> : vector<16xf32>
    %181 = vector.multi_reduction <add>, %180, %cst_63 [1] : vector<16x32xf32> to vector<16xf32>
    %182 = vector.shape_cast %181 : vector<16xf32> to vector<16x1xf32>
    %cst_64 = arith.constant 3.200000e+01 : f32
    %183 = vector.broadcast %cst_64 : f32 to vector<16x1xf32>
    %184 = arith.divf %182, %183 : vector<16x1xf32>
    %185 = vector.broadcast %177 : vector<16x1xf32> to vector<16x32xf32>
    %186 = arith.subf %173, %185 : vector<16x32xf32>
    %cst_65 = arith.constant 9.99999974E-6 : f32
    %187 = vector.broadcast %cst_65 : f32 to vector<16x1xf32>
    %188 = arith.addf %184, %187 : vector<16x1xf32>
    %189 = math.rsqrt %188 : vector<16x1xf32>
    %190 = vector.broadcast %189 : vector<16x1xf32> to vector<16x32xf32>
    %191 = arith.mulf %186, %190 : vector<16x32xf32>
    %192 = vector.shape_cast %129 : vector<32xf32> to vector<1x32xf32>
    %193 = vector.broadcast %192 : vector<1x32xf32> to vector<16x32xf32>
    %194 = arith.mulf %191, %193 : vector<16x32xf32>
    %195 = vector.shape_cast %131 : vector<32xf32> to vector<1x32xf32>
    %196 = vector.broadcast %195 : vector<1x32xf32> to vector<16x32xf32>
    %197 = arith.addf %194, %196 : vector<16x32xf32>
    %cst_66 = arith.constant 0.000000e+00 : f32
    %198 = vector.broadcast %cst_66 : f32 to vector<16x32xf32>
    %199 = arith.maximumf %197, %198 : vector<16x32xf32>
    %200 = arith.addf %199, %117 : vector<16x32xf32>
    %cst_67 = arith.constant 0.000000e+00 : f32
    %201 = vector.broadcast %cst_67 : f32 to vector<16x32xf32>
    %202 = arith.maximumf %200, %201 : vector<16x32xf32>
    %cst_68 = arith.constant dense<0.000000e+00> : vector<16xf32>
    %203 = vector.multi_reduction <add>, %202, %cst_68 [1] : vector<16x32xf32> to vector<16xf32>
    %204 = vector.shape_cast %203 : vector<16xf32> to vector<16x1xf32>
    %cst_69 = arith.constant 3.200000e+01 : f32
    %205 = vector.broadcast %cst_69 : f32 to vector<16x1xf32>
    %206 = arith.divf %204, %205 : vector<16x1xf32>
    %207 = vector.broadcast %206 : vector<16x1xf32> to vector<16x32xf32>
    %208 = arith.subf %202, %207 : vector<16x32xf32>
    %209 = arith.mulf %208, %208 : vector<16x32xf32>
    %cst_70 = arith.constant dense<0.000000e+00> : vector<16xf32>
    %210 = vector.multi_reduction <add>, %209, %cst_70 [1] : vector<16x32xf32> to vector<16xf32>
    %211 = vector.shape_cast %210 : vector<16xf32> to vector<16x1xf32>
    %cst_71 = arith.constant 3.200000e+01 : f32
    %212 = vector.broadcast %cst_71 : f32 to vector<16x1xf32>
    %213 = arith.divf %211, %212 : vector<16x1xf32>
    %214 = vector.broadcast %206 : vector<16x1xf32> to vector<16x32xf32>
    %215 = arith.subf %202, %214 : vector<16x32xf32>
    %cst_72 = arith.constant 9.99999974E-6 : f32
    %216 = vector.broadcast %cst_72 : f32 to vector<16x1xf32>
    %217 = arith.addf %213, %216 : vector<16x1xf32>
    %218 = math.rsqrt %217 : vector<16x1xf32>
    %219 = vector.broadcast %218 : vector<16x1xf32> to vector<16x32xf32>
    %220 = arith.mulf %215, %219 : vector<16x32xf32>
    %221 = vector.shape_cast %6 : vector<32xf32> to vector<1x32xf32>
    %222 = vector.broadcast %221 : vector<1x32xf32> to vector<16x32xf32>
    %223 = arith.mulf %220, %222 : vector<16x32xf32>
    %224 = vector.shape_cast %8 : vector<32xf32> to vector<1x32xf32>
    %225 = vector.broadcast %224 : vector<1x32xf32> to vector<16x32xf32>
    %226 = arith.addf %223, %225 : vector<16x32xf32>
    %c0_73 = arith.constant 0 : index
    %c0_74 = arith.constant 0 : index
    %c0_75 = arith.constant 0 : index
    %227 = vector.load %arg9[%c0_73, %c0_74, %c0_75] : memref<1x16x32xf32, #tpu.memory_space<vmem>>, vector<1x16x32xf32>
    %228 = vector.shape_cast %227 : vector<1x16x32xf32> to vector<16x32xf32>
    %229 = vector.shape_cast %226 : vector<16x32xf32> to vector<1x16x32xf32>
    tpu.vector_store %arg9[%c0_73, %c0_74, %c0_75], %229 {strides = array<i32>} : memref<1x16x32xf32, #tpu.memory_space<vmem>>, vector<1x16x32xf32>,
    return
  }
  func.func @transform_0(%arg0: i32) -> (i32, i32, i32) {
    %c0_i32 = arith.constant 0 : i32
    %c0_i32_0 = arith.constant 0 : i32
    %c0_i32_1 = arith.constant 0 : i32
    return %arg0, %c0_i32, %c0_i32_0 : i32, i32, i32
  }
  func.func @transform_1(%arg0: i32) -> (i32, i32, i32) {
    %c0_i32 = arith.constant 0 : i32
    %c0_i32_0 = arith.constant 0 : i32
    %c0_i32_1 = arith.constant 0 : i32
    return %arg0, %c0_i32, %c0_i32_0 : i32, i32, i32
  }
  func.func @transform_2(%arg0: i32) -> (i32, i32, i32) {
    %c0_i32 = arith.constant 0 : i32
    %c0_i32_0 = arith.constant 0 : i32
    %c0_i32_1 = arith.constant 0 : i32
    %c0_i32_2 = arith.constant 0 : i32
    return %c0_i32, %c0_i32_0, %c0_i32_1 : i32, i32, i32
  }
  func.func @transform_3(%arg0: i32) -> (i32, i32) {
    %c0_i32 = arith.constant 0 : i32
    %c0_i32_0 = arith.constant 0 : i32
    %c0_i32_1 = arith.constant 0 : i32
    return %c0_i32, %c0_i32_0 : i32, i32
  }
  func.func @transform_4(%arg0: i32) -> (i32, i32, i32) {
    %c0_i32 = arith.constant 0 : i32
    %c0_i32_0 = arith.constant 0 : i32
    %c0_i32_1 = arith.constant 0 : i32
    %c0_i32_2 = arith.constant 0 : i32
    return %c0_i32, %c0_i32_0, %c0_i32_1 : i32, i32, i32
  }
  func.func @transform_5(%arg0: i32) -> (i32, i32) {
    %c0_i32 = arith.constant 0 : i32
    %c0_i32_0 = arith.constant 0 : i32
    %c0_i32_1 = arith.constant 0 : i32
    return %c0_i32, %c0_i32_0 : i32, i32
  }
  func.func @transform_6(%arg0: i32) -> (i32, i32, i32) {
    %c0_i32 = arith.constant 0 : i32
    %c0_i32_0 = arith.constant 0 : i32
    %c0_i32_1 = arith.constant 0 : i32
    %c0_i32_2 = arith.constant 0 : i32
    return %c0_i32, %c0_i32_0, %c0_i32_1 : i32, i32, i32
  }
  func.func @transform_7(%arg0: i32) -> (i32, i32) {
    %c0_i32 = arith.constant 0 : i32
    %c0_i32_0 = arith.constant 0 : i32
    %c0_i32_1 = arith.constant 0 : i32
    return %c0_i32, %c0_i32_0 : i32, i32
  }
  func.func @transform_8(%arg0: i32) -> (i32, i32, i32) {
    %c0_i32 = arith.constant 0 : i32
    %c0_i32_0 = arith.constant 0 : i32
    %c0_i32_1 = arith.constant 0 : i32
    return %arg0, %c0_i32, %c0_i32_0 : i32, i32, i32
  }
}

</mosaic_0001>

<llo_original>
// kernel: gcn_module_forward.1
$region0: #{gcn_module_forward.1}
  #allocation0 [shape = 'u32[]', space=smem, size = 0x4, offset = 0x4, fixed_abs, tag = 'smem constant byte address 0x4 - core index']
  #allocation1 [shape = 'u32[144,128]{1,0:T(1,128)}', space=vmem, size = 0x12000, scoped, tag = 'internal scratch']
  %s0 = inlined_call_operand.vmem [shape: f32[2,16,32], index: 0, kind: input, shape index: {}]
  %s1 = inlined_call_operand.vmem [shape: f32[2,16,96], index: 1, kind: input, shape index: {}]
  %s2 = inlined_call_operand.vmem [shape: f32[2,32,192], index: 2, kind: input, shape index: {}]
  %s3 = inlined_call_operand.vmem [shape: f32[2,32], index: 3, kind: input, shape index: {}]
  %s4 = inlined_call_operand.vmem [shape: f32[2,32,32], index: 4, kind: input, shape index: {}]
  %s5 = inlined_call_operand.vmem [shape: f32[2,32], index: 5, kind: input, shape index: {}]
  %s6 = inlined_call_operand.vmem [shape: f32[2,2,32], index: 6, kind: input, shape index: {}]
  %s7 = inlined_call_operand.vmem [shape: f32[2,32], index: 7, kind: input, shape index: {}]
  %s8 = inlined_call_operand.hbm [shape: f32[2,16,32], index: 8, kind: output, shape index: {}]
  %s9 = sld [smem:[#allocation0]]
  $region65: #{gcn_module_forward.1} parent=0
    _
  %s11 = ssub.s32 1, %s9
  %s12 = scalar_select 0, %s11, %s9
  $region1: #{gcn_module_forward.1} parent=0
    #allocation2 [shape = 'u8[16384]{0}', space=vmem, size = 0x4000, scoped, tag = 'output window, operand 0']
    #allocation3 [shape = 's32[2]{0}', space=sflag, size = 0x8, scoped, tag = 'scoped memory for gcn_module_forward.1']
    %13 = vsyncpa [#allocation3], 0
    %s14 = scalar_lea.sflag [#allocation3], 1
    %15 = vsyncpa %s14, 0
    loop: start=0, step=1, limit=4
    $region2: #{gcn_module_forward.1} parent=1 // loop_pre_header
      _
    $region3: #{gcn_module_forward.1} parent=1 // loop_header
      %s17 = sphi 0, %s21
      %p18 = scmp.ge.s32.totalorder %s17, 4
      %s27 = sphi 0, %s29
      %s30 = sphi 0, %s27
      %s31 = sphi 0, %s30
      %s47 = sphi 0, %s31
      %s53 = sphi 0, %s55
      %s56 = sphi 0, %s53
      %s57 = sphi 0, %s56
      %s73 = sphi 0, %s57
      %s77 = sphi 0, %s77
      %s79 = sphi 0, %s77
      %s80 = sphi 0, %s79
      %s94 = sphi 0, %s80
      %s98 = sphi 0, %s98
      %s100 = sphi 0, %s98
      %s101 = sphi 0, %s100
      %s115 = sphi 0, %s101
      %s119 = sphi 0, %s119
      %s121 = sphi 0, %s119
      %s122 = sphi 0, %s121
      %s136 = sphi 0, %s122
      %s140 = sphi 0, %s140
      %s142 = sphi 0, %s140
      %s143 = sphi 0, %s142
      %s157 = sphi 0, %s143
      %s161 = sphi 0, %s161
      %s163 = sphi 0, %s161
      %s164 = sphi 0, %s163
      %s178 = sphi 0, %s164
      %s182 = sphi 0, %s182
      %s184 = sphi 0, %s182
      %s185 = sphi 0, %s184
      %s199 = sphi 0, %s185
      %s205 = sphi 0, %s207
      %s208 = sphi 0, %s205
      %s209 = sphi 0, %s208
      %s225 = sphi 0, %s209
    $region4: #{gcn_module_forward.1} parent=1 // loop_header_branch
      %20 = sbr.rel (%p18) target = $region8
    $region5: #{gcn_module_forward.1} parent=1 // loop_body
      %s22 = ssub.s32 %s17, 1
      %s23 = ssub.s32 %s17, 2
      %s24 = sadd.s32 %s17, 1
      %s25 = ssub.s32 %s17, %s24
      %p26 = scmp.eq.s32.totalorder %s25, 0
      %s28 = sadd.s32 %s27, 1
      %s29 = scalar_select %p26, %s27, %s28
      %p32 = pneg %p26
      %p33 = scmp.eq.s32.totalorder %s17, 1
      %p34 = por %p32, %p33
      %p35 = scmp.ne.s32.totalorder %s27, %s30
      %p36 = scmp.eq.s32.totalorder %s17, 0
      %p37 = por %p35, %p36
      %p38 = scmp.ne.s32.totalorder %s27, %s30
      %p39 = scmp.eq.s32.totalorder %s22, 1
      %p40 = por %p38, %p39
      %p41 = scmp.ne.s32.totalorder %s30, %s31
      %p42 = scmp.eq.s32.totalorder %s22, 0
      %p43 = por %p41, %p42
      %p44 = scmp.ne.s32.totalorder %s30, %s31
      %p45 = scmp.eq.s32.totalorder %s23, 1
      %p46 = por %p44, %p45
      %p48 = scmp.ne.s32.totalorder %s31, %s47
      %p49 = scmp.eq.s32.totalorder %s23, 0
      %p50 = por %p48, %p49
      %s51 = ssub.s32 %s17, %s24
      %p52 = scmp.eq.s32.totalorder %s51, 0
      %s54 = sadd.s32 %s53, 1
      %s55 = scalar_select %p52, %s53, %s54
      %p58 = pneg %p52
      %p59 = scmp.eq.s32.totalorder %s17, 1
      %p60 = por %p58, %p59
      %p61 = scmp.ne.s32.totalorder %s53, %s56
      %p62 = scmp.eq.s32.totalorder %s17, 0
      %p63 = por %p61, %p62
      %p64 = scmp.ne.s32.totalorder %s53, %s56
      %p65 = scmp.eq.s32.totalorder %s22, 1
      %p66 = por %p64, %p65
      %p67 = scmp.ne.s32.totalorder %s56, %s57
      %p68 = scmp.eq.s32.totalorder %s22, 0
      %p69 = por %p67, %p68
      %p70 = scmp.ne.s32.totalorder %s56, %s57
      %p71 = scmp.eq.s32.totalorder %s23, 1
      %p72 = por %p70, %p71
      %p74 = scmp.ne.s32.totalorder %s57, %s73
      %p75 = scmp.eq.s32.totalorder %s23, 0
      %p76 = por %p74, %p75
      %s78 = sadd.s32 %s77, 1
      %p81 = scmp.eq.s32.totalorder %s17, 1
      %p82 = scmp.ne.s32.totalorder %s77, %s79
      %p83 = scmp.eq.s32.totalorder %s17, 0
      %p84 = por %p82, %p83
      %p85 = scmp.ne.s32.totalorder %s77, %s79
      %p86 = scmp.eq.s32.totalorder %s22, 1
      %p87 = por %p85, %p86
      %p88 = scmp.ne.s32.totalorder %s79, %s80
      %p89 = scmp.eq.s32.totalorder %s22, 0
      %p90 = por %p88, %p89
      %p91 = scmp.ne.s32.totalorder %s79, %s80
      %p92 = scmp.eq.s32.totalorder %s23, 1
      %p93 = por %p91, %p92
      %p95 = scmp.ne.s32.totalorder %s80, %s94
      %p96 = scmp.eq.s32.totalorder %s23, 0
      %p97 = por %p95, %p96
      %s99 = sadd.s32 %s98, 1
      %p102 = scmp.eq.s32.totalorder %s17, 1
      %p103 = scmp.ne.s32.totalorder %s98, %s100
      %p104 = scmp.eq.s32.totalorder %s17, 0
      %p105 = por %p103, %p104
      %p106 = scmp.ne.s32.totalorder %s98, %s100
      %p107 = scmp.eq.s32.totalorder %s22, 1
      %p108 = por %p106, %p107
      %p109 = scmp.ne.s32.totalorder %s100, %s101
      %p110 = scmp.eq.s32.totalorder %s22, 0
      %p111 = por %p109, %p110
      %p112 = scmp.ne.s32.totalorder %s100, %s101
      %p113 = scmp.eq.s32.totalorder %s23, 1
      %p114 = por %p112, %p113
      %p116 = scmp.ne.s32.totalorder %s101, %s115
      %p117 = scmp.eq.s32.totalorder %s23, 0
      %p118 = por %p116, %p117
      %s120 = sadd.s32 %s119, 1
      %p123 = scmp.eq.s32.totalorder %s17, 1
      %p124 = scmp.ne.s32.totalorder %s119, %s121
      %p125 = scmp.eq.s32.totalorder %s17, 0
      %p126 = por %p124, %p125
      %p127 = scmp.ne.s32.totalorder %s119, %s121
      %p128 = scmp.eq.s32.totalorder %s22, 1
      %p129 = por %p127, %p128
      %p130 = scmp.ne.s32.totalorder %s121, %s122
      %p131 = scmp.eq.s32.totalorder %s22, 0
      %p132 = por %p130, %p131
      %p133 = scmp.ne.s32.totalorder %s121, %s122
      %p134 = scmp.eq.s32.totalorder %s23, 1
      %p135 = por %p133, %p134
      %p137 = scmp.ne.s32.totalorder %s122, %s136
      %p138 = scmp.eq.s32.totalorder %s23, 0
      %p139 = por %p137, %p138
      %s141 = sadd.s32 %s140, 1
      %p144 = scmp.eq.s32.totalorder %s17, 1
      %p145 = scmp.ne.s32.totalorder %s140, %s142
      %p146 = scmp.eq.s32.totalorder %s17, 0
      %p147 = por %p145, %p146
      %p148 = scmp.ne.s32.totalorder %s140, %s142
      %p149 = scmp.eq.s32.totalorder %s22, 1
      %p150 = por %p148, %p149
      %p151 = scmp.ne.s32.totalorder %s142, %s143
      %p152 = scmp.eq.s32.totalorder %s22, 0
      %p153 = por %p151, %p152
      %p154 = scmp.ne.s32.totalorder %s142, %s143
      %p155 = scmp.eq.s32.totalorder %s23, 1
      %p156 = por %p154, %p155
      %p158 = scmp.ne.s32.totalorder %s143, %s157
      %p159 = scmp.eq.s32.totalorder %s23, 0
      %p160 = por %p158, %p159
      %s162 = sadd.s32 %s161, 1
      %p165 = scmp.eq.s32.totalorder %s17, 1
      %p166 = scmp.ne.s32.totalorder %s161, %s163
      %p167 = scmp.eq.s32.totalorder %s17, 0
      %p168 = por %p166, %p167
      %p169 = scmp.ne.s32.totalorder %s161, %s163
      %p170 = scmp.eq.s32.totalorder %s22, 1
      %p171 = por %p169, %p170
      %p172 = scmp.ne.s32.totalorder %s163, %s164
      %p173 = scmp.eq.s32.totalorder %s22, 0
      %p174 = por %p172, %p173
      %p175 = scmp.ne.s32.totalorder %s163, %s164
      %p176 = scmp.eq.s32.totalorder %s23, 1
      %p177 = por %p175, %p176
      %p179 = scmp.ne.s32.totalorder %s164, %s178
      %p180 = scmp.eq.s32.totalorder %s23, 0
      %p181 = por %p179, %p180
      %s183 = sadd.s32 %s182, 1
      %p186 = scmp.eq.s32.totalorder %s17, 1
      %p187 = scmp.ne.s32.totalorder %s182, %s184
      %p188 = scmp.eq.s32.totalorder %s17, 0
      %p189 = por %p187, %p188
      %p190 = scmp.ne.s32.totalorder %s182, %s184
      %p191 = scmp.eq.s32.totalorder %s22, 1
      %p192 = por %p190, %p191
      %p193 = scmp.ne.s32.totalorder %s184, %s185
      %p194 = scmp.eq.s32.totalorder %s22, 0
      %p195 = por %p193, %p194
      %p196 = scmp.ne.s32.totalorder %s184, %s185
      %p197 = scmp.eq.s32.totalorder %s23, 1
      %p198 = por %p196, %p197
      %p200 = scmp.ne.s32.totalorder %s185, %s199
      %p201 = scmp.eq.s32.totalorder %s23, 0
      %p202 = por %p200, %p201
      %s203 = ssub.s32 %s17, %s24
      %p204 = scmp.eq.s32.totalorder %s203, 0
      %s206 = sadd.s32 %s205, 1
      %s207 = scalar_select %p204, %s205, %s206
      %p210 = pneg %p204
      %p211 = scmp.eq.s32.totalorder %s17, 1
      %p212 = por %p210, %p211
      %p213 = scmp.ne.s32.totalorder %s205, %s208
      %p214 = scmp.eq.s32.totalorder %s17, 0
      %p215 = por %p213, %p214
      %p216 = scmp.ne.s32.totalorder %s205, %s208
      %p217 = scmp.eq.s32.totalorder %s22, 1
      %p218 = por %p216, %p217
      %p219 = scmp.ne.s32.totalorder %s208, %s209
      %p220 = scmp.eq.s32.totalorder %s22, 0
      %p221 = por %p219, %p220
      %p222 = scmp.ne.s32.totalorder %s208, %s209
      %p223 = scmp.eq.s32.totalorder %s23, 1
      %p224 = por %p222, %p223
      %p226 = scmp.ne.s32.totalorder %s209, %s225
      %p227 = scmp.eq.s32.totalorder %s23, 0
      %p228 = por %p226, %p227
      %p229 = scmp.le.s32.totalorder 1, %s17
      %p230 = scmp.lt.s32.totalorder %s17, 3
      %p231 = pnand %p229, %p230
      %p232 = pneg %p231
      // Predicated region
      $region9: #{gcn_module_forward.1} parent=5 // pred_check
        _
      $region10: #{gcn_module_forward.1} parent=5 // pred_check_branch
        %234 = sbr.rel (%p231) target = $region12
      $region11: #{gcn_module_forward.1} parent=5 // pred_region
        %s235 = ssub.s32 %s17, 1
        // Predicated region
        $region13: #{gcn_module_forward.1} parent=11 // pred_check
          %p236 = pneg %p90
        $region14: #{gcn_module_forward.1} parent=11 // pred_check_branch
          %238 = sbr.rel (%p236) target = $region16
        $region15: #{gcn_module_forward.1} parent=11 // pred_region
          _
        $region16: #{gcn_module_forward.1} parent=11 // pred_fallthru
          _
        // Predicated region
        $region17: #{gcn_module_forward.1} parent=11 // pred_check
          %p239 = pneg %p111
        $region18: #{gcn_module_forward.1} parent=11 // pred_check_branch
          %241 = sbr.rel (%p239) target = $region20
        $region19: #{gcn_module_forward.1} parent=11 // pred_region
          _
        $region20: #{gcn_module_forward.1} parent=11 // pred_fallthru
          _
        // Predicated region
        $region21: #{gcn_module_forward.1} parent=11 // pred_check
          %p242 = pneg %p132
        $region22: #{gcn_module_forward.1} parent=11 // pred_check_branch
          %244 = sbr.rel (%p242) target = $region24
        $region23: #{gcn_module_forward.1} parent=11 // pred_region
          _
        $region24: #{gcn_module_forward.1} parent=11 // pred_fallthru
          _
        // Predicated region
        $region25: #{gcn_module_forward.1} parent=11 // pred_check
          %p245 = pneg %p153
        $region26: #{gcn_module_forward.1} parent=11 // pred_check_branch
          %247 = sbr.rel (%p245) target = $region28
        $region27: #{gcn_module_forward.1} parent=11 // pred_region
          _
        $region28: #{gcn_module_forward.1} parent=11 // pred_fallthru
          _
        // Predicated region
        $region29: #{gcn_module_forward.1} parent=11 // pred_check
          %p248 = pneg %p174
        $region30: #{gcn_module_forward.1} parent=11 // pred_check_branch
          %250 = sbr.rel (%p248) target = $region32
        $region31: #{gcn_module_forward.1} parent=11 // pred_region
          _
        $region32: #{gcn_module_forward.1} parent=11 // pred_fallthru
          _
        // Predicated region
        $region33: #{gcn_module_forward.1} parent=11 // pred_check
          %p251 = pneg %p195
        $region34: #{gcn_module_forward.1} parent=11 // pred_check_branch
          %253 = sbr.rel (%p251) target = $region36
        $region35: #{gcn_module_forward.1} parent=11 // pred_region
          _
        $region36: #{gcn_module_forward.1} parent=11 // pred_fallthru
          _
      $region12: #{gcn_module_forward.1} parent=5 // pred_fallthru
        _
      %p254 = scmp.lt.s32.totalorder %s17, 2
      // Predicated region
      $region37: #{gcn_module_forward.1} parent=5 // pred_check
        %p255 = pneg %p254
      $region38: #{gcn_module_forward.1} parent=5 // pred_check_branch
        %257 = sbr.rel (%p255) target = $region40
      $region39: #{gcn_module_forward.1} parent=5 // pred_region
        // Predicated region
        $region41: #{gcn_module_forward.1} parent=39 // pred_check
          %p258 = pneg %p37
        $region42: #{gcn_module_forward.1} parent=39 // pred_check_branch
          %260 = sbr.rel (%p258) target = $region44
        $region43: #{gcn_module_forward.1} parent=39 // pred_region
          %p261 = scmp.lt.s32.totalorder %s17, 1
          %s262 = scalar_select %p261, %s17, 1
          %s263 = smul.addr %s262, 2
          %s264 = smul.addr %s263, 8
          %s265 = scalar_lea.vmem %s0, %s264
        $region44: #{gcn_module_forward.1} parent=39 // pred_fallthru
          _
        // Predicated region
        $region45: #{gcn_module_forward.1} parent=39 // pred_check
          %p266 = pneg %p63
        $region46: #{gcn_module_forward.1} parent=39 // pred_check_branch
          %268 = sbr.rel (%p266) target = $region48
        $region47: #{gcn_module_forward.1} parent=39 // pred_region
          %p269 = scmp.lt.s32.totalorder %s17, 1
          %s270 = scalar_select %p269, %s17, 1
          %s271 = smul.addr %s270, 2
          %s272 = smul.addr %s271, 8
          %s273 = scalar_lea.vmem %s1, %s272
        $region48: #{gcn_module_forward.1} parent=39 // pred_fallthru
          _
      $region40: #{gcn_module_forward.1} parent=5 // pred_fallthru
        _
      %p274 = scmp.le.s32.totalorder 1, %s17
      %p275 = scmp.lt.s32.totalorder %s17, 3
      %p276 = pnand %p274, %p275
      %p277 = pneg %p276
      // Predicated region
      $region49: #{gcn_module_forward.1} parent=5 // pred_check
        _
      $region50: #{gcn_module_forward.1} parent=5 // pred_check_branch
        %279 = sbr.rel (%p276) target = $region52
      $region51: #{gcn_module_forward.1} parent=5 // pred_region
        %s280 = ssub.s32 %s17, 1
        %p281 = scmp.lt.s32.totalorder %s22, 1
        %s282 = scalar_select %p281, %s22, 1
        %s283 = smul.addr %s282, 2
        %s284 = smul.addr %s283, 8
        %s285 = scalar_lea.vmem %s0, %s284
        %p286 = pneg %p43
        %p287 = pneg %p40
        %p288 = scmp.lt.s32.totalorder %s22, 1
        %s289 = scalar_select %p288, %s22, 1
        %s290 = smul.addr %s289, 2
        %s291 = smul.addr %s290, 8
        %s292 = scalar_lea.vmem %s1, %s291
        %p293 = pneg %p69
        %p294 = pneg %p66
        %p295 = pneg %p90
        %p296 = pneg %p87
        %p297 = pneg %p111
        %p298 = pneg %p108
        %p299 = pneg %p132
        %p300 = pneg %p129
        %p301 = pneg %p153
        %p302 = pneg %p150
        %p303 = pneg %p174
        %p304 = pneg %p171
        %p305 = pneg %p195
        %p306 = pneg %p192
        %p307 = pneg %p221
        %p308 = pneg %p218
        %s309 = sand.u32 %s208, 1
        %s310 = scalar_lea.sflag [#allocation3], %s309
        %s311 = sand.u32 %s208, 1
        %s312 = smul.addr %s311, 16
        %s313 = scalar_lea.vmem [#allocation2], %s312
        %p314 = scmp.lt.s32.totalorder %s22, 1
        %s315 = scalar_select %p314, %s22, 1
        %s316 = smul.addr %s315, 2
        %s317 = smul.addr %s316, 8
        %s318 = scalar_lea.vmem %s0, %s317
        %p319 = scmp.lt.s32.totalorder %s22, 1
        %s320 = scalar_select %p319, %s22, 1
        %s321 = smul.addr %s320, 2
        %s322 = smul.addr %s321, 8
        %s323 = scalar_lea.vmem %s1, %s322
        %v324 = vld [vmem:[%s318] sm:$0xff]
        %v325 = vld [vmem:[%s318 + $0x8] sm:$0xff]
        %v326 = vld [vmem:[%s323] sm:$0xff]
        %v327 = vld [vmem:[%s323 + $0x8] sm:$0xff]
        %v328 = vld [vmem:[%s7] sm:$0x3]
        %v329 = vld [vmem:[%s2] sm:$0xff]
        %v330 = vld [vmem:[%s2 + $0x8] sm:$0xff]
        %v331 = vld [vmem:[%s2 + $0x10] sm:$0xff]
        %v332 = vld [vmem:[%s2 + $0x18] sm:$0xff]
        %v333 = vld [vmem:[%s2 + $0x20] sm:$0xff]
        %v334 = vld [vmem:[%s2 + $0x28] sm:$0xff]
        %v335 = vld [vmem:[%s2 + $0x30] sm:$0xff]
        %v336 = vld [vmem:[%s2 + $0x38] sm:$0xff]
        %v337 = vld [vmem:[%s3] sm:$0x1]
        %v338 = vld [vmem:[%s4] sm:$0xff]
        %v339 = vld [vmem:[%s4 + $0x8] sm:$0xff]
        %v340 = vld [vmem:[%s4 + $0x10] sm:$0xff]
        %v341 = vld [vmem:[%s4 + $0x18] sm:$0xff]
        %v342 = vld [vmem:[%s5] sm:$0x1]
        %v343 = vld [vmem:[%s6] sm:$0x3]
        %vm344 = vcmask 261120
        %v346 = vsel %vm344, %v324, 0
        %v349 = vsel %vm344, %v325, 0
        %351 = vmatprep.subr.mxu0 0.0
        %352 = vmatpush1.msra.mxu0 0.0
        %353 = vmatprep.subr.mxu0 0.0
        %354 = vmatpush1.msra.mxu0 0.0
        %355 = vmatprep.subr.mxu0 0.0
        %356 = vmatpush1.msra.mxu0 0.0
        %357 = vmatprep.subr.mxu0 0.0
        %358 = vmatpush1.msra.mxu0 0.0
        %359 = vmatprep.subr.mxu0 0.0
        %360 = vmatpush1.msra.mxu0 0.0
        %361 = vmatprep.subr.mxu0 0.0
        %362 = vmatpush1.msra.mxu0 0.0
        %363 = vmatprep.subr.mxu0 0.0
        %364 = vmatpush1.msra.mxu0 0.0
        %365 = vmatprep.subr.mxu0 0.0
        %366 = vmatpush1.msra.mxu0 0.0
        %367 = vmatprep.subr.mxu0 0.0
        %368 = vmatpush1.msra.mxu0 0.0
        %369 = vmatprep.subr.mxu0 0.0
        %370 = vmatpush1.msra.mxu0 0.0
        %371 = vmatprep.subr.mxu0 0.0
        %372 = vmatpush1.msra.mxu0 0.0
        %373 = vmatprep.subr.mxu0 0.0
        %374 = vmatpush1.msra.mxu0 0.0
        %375 = vmatprep.subr.mxu0 %v336
        %376 = vmatpush1.msra.mxu0 %v335
        %377 = vmatprep.subr.mxu0 %v334
        %378 = vmatpush1.msra.mxu0 %v333
        %379 = vmatprep.subr.mxu0 %v332
        %380 = vmatpush1.msra.mxu0 %v331
        %381 = vmatprep.subr.mxu0 %v330
        %382 = vmatpush1.msra.mxu0 %v329
        %383 = vmatprep.subr.mxu0 0.0
        %384 = vmatpush2.msra.mxu0 0.0
        %385 = vmatprep.subr.mxu0 0.0
        %386 = vmatpush2.msra.mxu0 0.0
        %387 = vmatprep.subr.mxu0 0.0
        %388 = vmatpush2.msra.mxu0 0.0
        %389 = vmatprep.subr.mxu0 0.0
        %390 = vmatpush2.msra.mxu0 0.0
        %391 = vmatprep.subr.mxu0 0.0
        %392 = vmatpush2.msra.mxu0 0.0
        %393 = vmatprep.subr.mxu0 0.0
        %394 = vmatpush2.msra.mxu0 0.0
        %395 = vmatprep.subr.mxu0 0.0
        %396 = vmatpush2.msra.mxu0 0.0
        %397 = vmatprep.subr.mxu0 0.0
        %398 = vmatpush2.msra.mxu0 0.0
        %399 = vmatprep.subr.mxu0 0.0
        %400 = vmatpush2.msra.mxu0 0.0
        %401 = vmatprep.subr.mxu0 0.0
        %402 = vmatpush2.msra.mxu0 0.0
        %403 = vmatprep.subr.mxu0 0.0
        %404 = vmatpush2.msra.mxu0 0.0
        %405 = vmatprep.subr.mxu0 0.0
        %406 = vmatpush2.msra.mxu0 0.0
        %407 = vmatprep.subr.mxu0 0.0
        %408 = vmatpush2.msra.mxu0 0.0
        %409 = vmatprep.subr.mxu0 0.0
        %410 = vmatpush2.msra.mxu0 0.0
        %411 = vmatprep.subr.mxu0 0.0
        %412 = vmatpush2.msra.mxu0 0.0
        %413 = vmatprep.subr.mxu0 0.0
        %414 = vmatpush2.msra.mxu0 0.0
        %415 = vmatprep.mubr.f32.mxu0 0.0
        %416 = vmatmul.mubr.f32.gmra.mxu0 %v346
        %v417 = vpop.f32.mrf.mxu0
        %v418 = vadd.f32 0.0, %v417
        %v419 = vpop.f32.mrf.mxu0
        %v420 = vadd.f32 0.0, %v419
        %421 = vmatprep.mubr.f32.mxu0 0.0
        %422 = vmatmul.mubr.f32.gmra.mxu0 %v349
        %v423 = vpop.f32.mrf.mxu0
        %v424 = vadd.f32 0.0, %v423
        %v425 = vpop.f32.mrf.mxu0
        %v426 = vadd.f32 0.0, %v425
        %427 = vdwg.mxu0
        %430 = vrot.lane.b32.xlu0 %v418, 96
        %v431 = vpop.permute.xlu0 %430
        %432 = vrot.lane.b32.xlu0 %v424, 96
        %v433 = vpop.permute.xlu0 %432
        %436 = vrot.lane.b32.xlu0 %v418, 64
        %v437 = vpop.permute.xlu0 %436
        %438 = vrot.lane.b32.xlu0 %v424, 64
        %v439 = vpop.permute.xlu0 %438
        %442 = vrot.lane.b32.xlu0 %v418, 32
        %v443 = vpop.permute.xlu0 %442
        %444 = vrot.lane.b32.xlu0 %v424, 32
        %v445 = vpop.permute.xlu0 %444
        %450 = vrot.lane.b32.xlu0 %v420, 96
        %v451 = vpop.permute.xlu0 %450
        %452 = vrot.lane.b32.xlu0 %v426, 96
        %v453 = vpop.permute.xlu0 %452
        %v456 = vlaneseq
        %v457 = vshrl.u32 %v456, 7
        %v458 = vsub.s32 0, %v457
        %v459 = vrot.slane %v337, %v458
        %vm460 = vcmask 785408
        %v462 = vsel %vm460, %v326, 0
        %v465 = vsel %vm460, %v327, 0
        %467 = vmatprep.subr.mxu0 0.0
        %468 = vmatpush1.msra.mxu0 0.0
        %469 = vmatprep.subr.mxu0 0.0
        %470 = vmatpush1.msra.mxu0 0.0
        %471 = vmatprep.subr.mxu0 0.0
        %472 = vmatpush1.msra.mxu0 0.0
        %473 = vmatprep.subr.mxu0 0.0
        %474 = vmatpush1.msra.mxu0 0.0
        %475 = vmatprep.subr.mxu0 0.0
        %476 = vmatpush1.msra.mxu0 %v453
        %477 = vmatprep.subr.mxu0 0.0
        %478 = vmatpush1.msra.mxu0 %v451
        %479 = vmatprep.subr.mxu0 0.0
        %480 = vmatpush1.msra.mxu0 %v426
        %481 = vmatprep.subr.mxu0 0.0
        %482 = vmatpush1.msra.mxu0 %v420
        %483 = vmatprep.subr.mxu0 0.0
        %484 = vmatpush1.msra.mxu0 %v445
        %485 = vmatprep.subr.mxu0 0.0
        %486 = vmatpush1.msra.mxu0 %v443
        %487 = vmatprep.subr.mxu0 0.0
        %488 = vmatpush1.msra.mxu0 %v439
        %489 = vmatprep.subr.mxu0 0.0
        %490 = vmatpush1.msra.mxu0 %v437
        %491 = vmatprep.subr.mxu0 0.0
        %492 = vmatpush1.msra.mxu0 %v433
        %493 = vmatprep.subr.mxu0 0.0
        %494 = vmatpush1.msra.mxu0 %v431
        %495 = vmatprep.subr.mxu0 0.0
        %496 = vmatpush1.msra.mxu0 %v424
        %497 = vmatprep.subr.mxu0 0.0
        %498 = vmatpush1.msra.mxu0 %v418
        %499 = vmatprep.subr.mxu0 0.0
        %500 = vmatpush2.msra.mxu0 0.0
        %501 = vmatprep.subr.mxu0 0.0
        %502 = vmatpush2.msra.mxu0 0.0
        %503 = vmatprep.subr.mxu0 0.0
        %504 = vmatpush2.msra.mxu0 0.0
        %505 = vmatprep.subr.mxu0 0.0
        %506 = vmatpush2.msra.mxu0 0.0
        %507 = vmatprep.subr.mxu0 0.0
        %508 = vmatpush2.msra.mxu0 0.0
        %509 = vmatprep.subr.mxu0 0.0
        %510 = vmatpush2.msra.mxu0 0.0
        %511 = vmatprep.subr.mxu0 0.0
        %512 = vmatpush2.msra.mxu0 0.0
        %513 = vmatprep.subr.mxu0 0.0
        %514 = vmatpush2.msra.mxu0 0.0
        %515 = vmatprep.subr.mxu0 0.0
        %516 = vmatpush2.msra.mxu0 0.0
        %517 = vmatprep.subr.mxu0 0.0
        %518 = vmatpush2.msra.mxu0 0.0
        %519 = vmatprep.subr.mxu0 0.0
        %520 = vmatpush2.msra.mxu0 0.0
        %521 = vmatprep.subr.mxu0 0.0
        %522 = vmatpush2.msra.mxu0 0.0
        %523 = vmatprep.subr.mxu0 0.0
        %524 = vmatpush2.msra.mxu0 0.0
        %525 = vmatprep.subr.mxu0 0.0
        %526 = vmatpush2.msra.mxu0 0.0
        %527 = vmatprep.subr.mxu0 0.0
        %528 = vmatpush2.msra.mxu0 0.0
        %529 = vmatprep.subr.mxu0 0.0
        %530 = vmatpush2.msra.mxu0 0.0
        %531 = vmatprep.mubr.f32.mxu0 0.0
        %532 = vmatmul.mubr.f32.gmra.mxu0 %v462
        %v533 = vpop.f32.mrf.mxu0
        %v534 = vadd.f32 %v459, %v533
        %v535 = vpop.f32.mrf.mxu0
        %536 = vmatprep.mubr.f32.mxu0 0.0
        %537 = vmatmul.mubr.f32.gmra.mxu0 %v465
        %v538 = vpop.f32.mrf.mxu0
        %v539 = vadd.f32 %v459, %v538
        %v540 = vpop.f32.mrf.mxu0
        %541 = vdwg.mxu0
        %v542 = vsel %vm344, %v534, 0.0
        %543 = vadd.xlane.f32.xlu0 %v542
        %v544 = vpop.xlane.xlu0 %543
        %v545 = vsel %vm344, %v539, 0.0
        %546 = vadd.xlane.f32.xlu0 %v545
        %v547 = vpop.xlane.xlu0 %546
        %v548 = vrcp.pop 32.0
        %v549 = vmul.f32 %v544, %v548
        %v550 = vmul.f32 %v547, %v548
        %v551 = vsub.f32 %v534, %v549
        %v552 = vsub.f32 %v539, %v550
        %v553 = vmul.f32 %v551, %v551
        %v554 = vmul.f32 %v552, %v552
        %v555 = vsel %vm344, %v553, 0.0
        %556 = vadd.xlane.f32.xlu0 %v555
        %v557 = vpop.xlane.xlu0 %556
        %v558 = vsel %vm344, %v554, 0.0
        %559 = vadd.xlane.f32.xlu0 %v558
        %v560 = vpop.xlane.xlu0 %559
        %v561 = vmul.f32 %v557, %v548
        %v562 = vmul.f32 %v560, %v548
        %v563 = vadd.f32 %v561, 1e-05
        %v564 = vadd.f32 %v562, 1e-05
        %v565 = vrsqrt.pop %v563
        %v566 = vrsqrt.pop %v564
        %v567 = vmul.f32 %v551, %v565
        %v568 = vmul.f32 %v552, %v566
        %v569 = vlaneseq
        %v570 = vshrl.u32 %v569, 7
        %v571 = vsub.s32 0, %v570
        %v572 = vrot.slane %v343, %v571
        %v573 = vmul.f32 %v567, %v572
        %v574 = vmul.f32 %v568, %v572
        %v575 = vlaneseq
        %v576 = vshrl.u32 %v575, 7
        %v577 = vsub.s32 1, %v576
        %v578 = vrot.slane %v343, %v577
        %v579 = vadd.f32 %v573, %v578
        %v580 = vadd.f32 %v574, %v578
        %v581 = vmax.f32 %v579, 0.0
        %v582 = vmax.f32 %v580, 0.0
        %v583 = vlaneseq
        %v584 = vshrl.u32 %v583, 7
        %v585 = vsub.s32 0, %v584
        %v586 = vrot.slane %v342, %v585
        %v588 = vsel %vm344, %v581, 0
        %v591 = vsel %vm344, %v582, 0
        %593 = vmatprep.subr.mxu0 0.0
        %594 = vmatpush1.msra.mxu0 0.0
        %595 = vmatprep.subr.mxu0 0.0
        %596 = vmatpush1.msra.mxu0 0.0
        %597 = vmatprep.subr.mxu0 0.0
        %598 = vmatpush1.msra.mxu0 0.0
        %599 = vmatprep.subr.mxu0 0.0
        %600 = vmatpush1.msra.mxu0 0.0
        %601 = vmatprep.subr.mxu0 0.0
        %602 = vmatpush1.msra.mxu0 0.0
        %603 = vmatprep.subr.mxu0 0.0
        %604 = vmatpush1.msra.mxu0 0.0
        %605 = vmatprep.subr.mxu0 0.0
        %606 = vmatpush1.msra.mxu0 0.0
        %607 = vmatprep.subr.mxu0 0.0
        %608 = vmatpush1.msra.mxu0 0.0
        %609 = vmatprep.subr.mxu0 0.0
        %610 = vmatpush1.msra.mxu0 0.0
        %611 = vmatprep.subr.mxu0 0.0
        %612 = vmatpush1.msra.mxu0 0.0
        %613 = vmatprep.subr.mxu0 0.0
        %614 = vmatpush1.msra.mxu0 0.0
        %615 = vmatprep.subr.mxu0 0.0
        %616 = vmatpush1.msra.mxu0 0.0
        %617 = vmatprep.subr.mxu0 0.0
        %618 = vmatpush1.msra.mxu0 %v341
        %619 = vmatprep.subr.mxu0 0.0
        %620 = vmatpush1.msra.mxu0 %v340
        %621 = vmatprep.subr.mxu0 0.0
        %622 = vmatpush1.msra.mxu0 %v339
        %623 = vmatprep.subr.mxu0 0.0
        %624 = vmatpush1.msra.mxu0 %v338
        %625 = vmatprep.subr.mxu0 0.0
        %626 = vmatpush2.msra.mxu0 0.0
        %627 = vmatprep.subr.mxu0 0.0
        %628 = vmatpush2.msra.mxu0 0.0
        %629 = vmatprep.subr.mxu0 0.0
        %630 = vmatpush2.msra.mxu0 0.0
        %631 = vmatprep.subr.mxu0 0.0
        %632 = vmatpush2.msra.mxu0 0.0
        %633 = vmatprep.subr.mxu0 0.0
        %634 = vmatpush2.msra.mxu0 0.0
        %635 = vmatprep.subr.mxu0 0.0
        %636 = vmatpush2.msra.mxu0 0.0
        %637 = vmatprep.subr.mxu0 0.0
        %638 = vmatpush2.msra.mxu0 0.0
        %639 = vmatprep.subr.mxu0 0.0
        %640 = vmatpush2.msra.mxu0 0.0
        %641 = vmatprep.subr.mxu0 0.0
        %642 = vmatpush2.msra.mxu0 0.0
        %643 = vmatprep.subr.mxu0 0.0
        %644 = vmatpush2.msra.mxu0 0.0
        %645 = vmatprep.subr.mxu0 0.0
        %646 = vmatpush2.msra.mxu0 0.0
        %647 = vmatprep.subr.mxu0 0.0
        %648 = vmatpush2.msra.mxu0 0.0
        %649 = vmatprep.subr.mxu0 0.0
        %650 = vmatpush2.msra.mxu0 0.0
        %651 = vmatprep.subr.mxu0 0.0
        %652 = vmatpush2.msra.mxu0 0.0
        %653 = vmatprep.subr.mxu0 0.0
        %654 = vmatpush2.msra.mxu0 0.0
        %655 = vmatprep.subr.mxu0 0.0
        %656 = vmatpush2.msra.mxu0 0.0
        %657 = vmatprep.mubr.f32.mxu0 0.0
        %658 = vmatmul.mubr.f32.gmra.mxu0 %v588
        %v659 = vpop.f32.mrf.mxu0
        %v660 = vadd.f32 %v586, %v659
        %v661 = vpop.f32.mrf.mxu0
        %662 = vmatprep.mubr.f32.mxu0 0.0
        %663 = vmatmul.mubr.f32.gmra.mxu0 %v591
        %v664 = vpop.f32.mrf.mxu0
        %v665 = vadd.f32 %v586, %v664
        %v666 = vpop.f32.mrf.mxu0
        %667 = vdwg.mxu0
        %v668 = vsel %vm344, %v660, 0.0
        %669 = vadd.xlane.f32.xlu0 %v668
        %v670 = vpop.xlane.xlu0 %669
        %v671 = vsel %vm344, %v665, 0.0
        %672 = vadd.xlane.f32.xlu0 %v671
        %v673 = vpop.xlane.xlu0 %672
        %v674 = vmul.f32 %v670, %v548
        %v675 = vmul.f32 %v673, %v548
        %v676 = vsub.f32 %v660, %v674
        %v677 = vsub.f32 %v665, %v675
        %v678 = vmul.f32 %v676, %v676
        %v679 = vmul.f32 %v677, %v677
        %v680 = vsel %vm344, %v678, 0.0
        %681 = vadd.xlane.f32.xlu0 %v680
        %v682 = vpop.xlane.xlu0 %681
        %v683 = vsel %vm344, %v679, 0.0
        %684 = vadd.xlane.f32.xlu0 %v683
        %v685 = vpop.xlane.xlu0 %684
        %v686 = vmul.f32 %v682, %v548
        %v687 = vmul.f32 %v685, %v548
        %v688 = vadd.f32 %v686, 1e-05
        %v689 = vadd.f32 %v687, 1e-05
        %v690 = vrsqrt.pop %v688
        %v691 = vrsqrt.pop %v689
        %v692 = vmul.f32 %v676, %v690
        %v693 = vmul.f32 %v677, %v691
        %v694 = vmul.f32 %v692, %v572
        %v695 = vmul.f32 %v693, %v572
        %v696 = vadd.f32 %v694, %v578
        %v697 = vadd.f32 %v695, %v578
        %v698 = vmax.f32 %v696, 0.0
        %v699 = vmax.f32 %v697, 0.0
        %v700 = vadd.f32 %v698, %v324
        %v701 = vadd.f32 %v699, %v325
        %v702 = vmax.f32 %v700, 0.0
        %v703 = vmax.f32 %v701, 0.0
        %v704 = vsel %vm344, %v702, 0.0
        %705 = vadd.xlane.f32.xlu0 %v704
        %v706 = vpop.xlane.xlu0 %705
        %v707 = vsel %vm344, %v703, 0.0
        %708 = vadd.xlane.f32.xlu0 %v707
        %v709 = vpop.xlane.xlu0 %708
        %v710 = vmul.f32 %v706, %v548
        %v711 = vmul.f32 %v709, %v548
        %v712 = vsub.f32 %v702, %v710
        %v713 = vsub.f32 %v703, %v711
        %v714 = vmul.f32 %v712, %v712
        %v715 = vmul.f32 %v713, %v713
        %v716 = vsel %vm344, %v714, 0.0
        %717 = vadd.xlane.f32.xlu0 %v716
        %v718 = vpop.xlane.xlu0 %717
        %v719 = vsel %vm344, %v715, 0.0
        %720 = vadd.xlane.f32.xlu0 %v719
        %v721 = vpop.xlane.xlu0 %720
        %v722 = vmul.f32 %v718, %v548
        %v723 = vmul.f32 %v721, %v548
        %v724 = vadd.f32 %v722, 1e-05
        %v725 = vadd.f32 %v723, 1e-05
        %v726 = vrsqrt.pop %v724
        %v727 = vrsqrt.pop %v725
        %v728 = vmul.f32 %v712, %v726
        %v729 = vmul.f32 %v713, %v727
        %v730 = vlaneseq
        %v731 = vshrl.u32 %v730, 7
        %v732 = vsub.s32 0, %v731
        %v733 = vrot.slane %v328, %v732
        %v734 = vmul.f32 %v728, %v733
        %v735 = vmul.f32 %v729, %v733
        %v736 = vlaneseq
        %v737 = vshrl.u32 %v736, 7
        %v738 = vsub.s32 1, %v737
        %v739 = vrot.slane %v328, %v738
        %v740 = vadd.f32 %v734, %v739
        %v741 = vadd.f32 %v735, %v739
        %s742 = scalar_lea.vmem %s2, 64
        %v743 = vld [vmem:[%s742] sm:$0xff]
        %v744 = vld [vmem:[%s742 + $0x8] sm:$0xff]
        %v745 = vld [vmem:[%s742 + $0x10] sm:$0xff]
        %v746 = vld [vmem:[%s742 + $0x18] sm:$0xff]
        %v747 = vld [vmem:[%s742 + $0x20] sm:$0xff]
        %v748 = vld [vmem:[%s742 + $0x28] sm:$0xff]
        %v749 = vld [vmem:[%s742 + $0x30] sm:$0xff]
        %v750 = vld [vmem:[%s742 + $0x38] sm:$0xff]
        %v751 = vld [vmem:[%s3 + $0x1] sm:$0x1]
        %s752 = scalar_lea.vmem %s4, 32
        %v753 = vld [vmem:[%s752] sm:$0xff]
        %v754 = vld [vmem:[%s752 + $0x8] sm:$0xff]
        %v755 = vld [vmem:[%s752 + $0x10] sm:$0xff]
        %v756 = vld [vmem:[%s752 + $0x18] sm:$0xff]
        %v757 = vld [vmem:[%s5 + $0x1] sm:$0x1]
        %s758 = scalar_lea.vmem %s6, 2
        %v759 = vld [vmem:[%s758] sm:$0x3]
        %v761 = vsel %vm344, %v740, 0
        %v764 = vsel %vm344, %v741, 0
        %766 = vmatprep.subr.mxu0 0.0
        %767 = vmatpush1.msra.mxu0 0.0
        %768 = vmatprep.subr.mxu0 0.0
        %769 = vmatpush1.msra.mxu0 0.0
        %770 = vmatprep.subr.mxu0 0.0
        %771 = vmatpush1.msra.mxu0 0.0
        %772 = vmatprep.subr.mxu0 0.0
        %773 = vmatpush1.msra.mxu0 0.0
        %774 = vmatprep.subr.mxu0 0.0
        %775 = vmatpush1.msra.mxu0 0.0
        %776 = vmatprep.subr.mxu0 0.0
        %777 = vmatpush1.msra.mxu0 0.0
        %778 = vmatprep.subr.mxu0 0.0
        %779 = vmatpush1.msra.mxu0 0.0
        %780 = vmatprep.subr.mxu0 0.0
        %781 = vmatpush1.msra.mxu0 0.0
        %782 = vmatprep.subr.mxu0 0.0
        %783 = vmatpush1.msra.mxu0 0.0
        %784 = vmatprep.subr.mxu0 0.0
        %785 = vmatpush1.msra.mxu0 0.0
        %786 = vmatprep.subr.mxu0 0.0
        %787 = vmatpush1.msra.mxu0 0.0
        %788 = vmatprep.subr.mxu0 0.0
        %789 = vmatpush1.msra.mxu0 0.0
        %790 = vmatprep.subr.mxu0 %v750
        %791 = vmatpush1.msra.mxu0 %v749
        %792 = vmatprep.subr.mxu0 %v748
        %793 = vmatpush1.msra.mxu0 %v747
        %794 = vmatprep.subr.mxu0 %v746
        %795 = vmatpush1.msra.mxu0 %v745
        %796 = vmatprep.subr.mxu0 %v744
        %797 = vmatpush1.msra.mxu0 %v743
        %798 = vmatprep.subr.mxu0 0.0
        %799 = vmatpush2.msra.mxu0 0.0
        %800 = vmatprep.subr.mxu0 0.0
        %801 = vmatpush2.msra.mxu0 0.0
        %802 = vmatprep.subr.mxu0 0.0
        %803 = vmatpush2.msra.mxu0 0.0
        %804 = vmatprep.subr.mxu0 0.0
        %805 = vmatpush2.msra.mxu0 0.0
        %806 = vmatprep.subr.mxu0 0.0
        %807 = vmatpush2.msra.mxu0 0.0
        %808 = vmatprep.subr.mxu0 0.0
        %809 = vmatpush2.msra.mxu0 0.0
        %810 = vmatprep.subr.mxu0 0.0
        %811 = vmatpush2.msra.mxu0 0.0
        %812 = vmatprep.subr.mxu0 0.0
        %813 = vmatpush2.msra.mxu0 0.0
        %814 = vmatprep.subr.mxu0 0.0
        %815 = vmatpush2.msra.mxu0 0.0
        %816 = vmatprep.subr.mxu0 0.0
        %817 = vmatpush2.msra.mxu0 0.0
        %818 = vmatprep.subr.mxu0 0.0
        %819 = vmatpush2.msra.mxu0 0.0
        %820 = vmatprep.subr.mxu0 0.0
        %821 = vmatpush2.msra.mxu0 0.0
        %822 = vmatprep.subr.mxu0 0.0
        %823 = vmatpush2.msra.mxu0 0.0
        %824 = vmatprep.subr.mxu0 0.0
        %825 = vmatpush2.msra.mxu0 0.0
        %826 = vmatprep.subr.mxu0 0.0
        %827 = vmatpush2.msra.mxu0 0.0
        %828 = vmatprep.subr.mxu0 0.0
        %829 = vmatpush2.msra.mxu0 0.0
        %830 = vmatprep.mubr.f32.mxu0 0.0
        %831 = vmatmul.mubr.f32.gmra.mxu0 %v761
        %v832 = vpop.f32.mrf.mxu0
        %v833 = vadd.f32 0.0, %v832
        %v834 = vpop.f32.mrf.mxu0
        %v835 = vadd.f32 0.0, %v834
        %836 = vmatprep.mubr.f32.mxu0 0.0
        %837 = vmatmul.mubr.f32.gmra.mxu0 %v764
        %v838 = vpop.f32.mrf.mxu0
        %v839 = vadd.f32 0.0, %v838
        %v840 = vpop.f32.mrf.mxu0
        %v841 = vadd.f32 0.0, %v840
        %842 = vdwg.mxu0
        %845 = vrot.lane.b32.xlu0 %v833, 96
        %v846 = vpop.permute.xlu0 %845
        %847 = vrot.lane.b32.xlu0 %v839, 96
        %v848 = vpop.permute.xlu0 %847
        %851 = vrot.lane.b32.xlu0 %v833, 64
        %v852 = vpop.permute.xlu0 %851
        %853 = vrot.lane.b32.xlu0 %v839, 64
        %v854 = vpop.permute.xlu0 %853
        %857 = vrot.lane.b32.xlu0 %v833, 32
        %v858 = vpop.permute.xlu0 %857
        %859 = vrot.lane.b32.xlu0 %v839, 32
        %v860 = vpop.permute.xlu0 %859
        %865 = vrot.lane.b32.xlu0 %v835, 96
        %v866 = vpop.permute.xlu0 %865
        %867 = vrot.lane.b32.xlu0 %v841, 96
        %v868 = vpop.permute.xlu0 %867
        %v871 = vlaneseq
        %v872 = vshrl.u32 %v871, 7
        %v873 = vsub.s32 0, %v872
        %v874 = vrot.slane %v751, %v873
        %875 = vmatprep.subr.mxu0 0.0
        %876 = vmatpush1.msra.mxu0 0.0
        %877 = vmatprep.subr.mxu0 0.0
        %878 = vmatpush1.msra.mxu0 0.0
        %879 = vmatprep.subr.mxu0 0.0
        %880 = vmatpush1.msra.mxu0 0.0
        %881 = vmatprep.subr.mxu0 0.0
        %882 = vmatpush1.msra.mxu0 0.0
        %883 = vmatprep.subr.mxu0 0.0
        %884 = vmatpush1.msra.mxu0 %v868
        %885 = vmatprep.subr.mxu0 0.0
        %886 = vmatpush1.msra.mxu0 %v866
        %887 = vmatprep.subr.mxu0 0.0
        %888 = vmatpush1.msra.mxu0 %v841
        %889 = vmatprep.subr.mxu0 0.0
        %890 = vmatpush1.msra.mxu0 %v835
        %891 = vmatprep.subr.mxu0 0.0
        %892 = vmatpush1.msra.mxu0 %v860
        %893 = vmatprep.subr.mxu0 0.0
        %894 = vmatpush1.msra.mxu0 %v858
        %895 = vmatprep.subr.mxu0 0.0
        %896 = vmatpush1.msra.mxu0 %v854
        %897 = vmatprep.subr.mxu0 0.0
        %898 = vmatpush1.msra.mxu0 %v852
        %899 = vmatprep.subr.mxu0 0.0
        %900 = vmatpush1.msra.mxu0 %v848
        %901 = vmatprep.subr.mxu0 0.0
        %902 = vmatpush1.msra.mxu0 %v846
        %903 = vmatprep.subr.mxu0 0.0
        %904 = vmatpush1.msra.mxu0 %v839
        %905 = vmatprep.subr.mxu0 0.0
        %906 = vmatpush1.msra.mxu0 %v833
        %907 = vmatprep.subr.mxu0 0.0
        %908 = vmatpush2.msra.mxu0 0.0
        %909 = vmatprep.subr.mxu0 0.0
        %910 = vmatpush2.msra.mxu0 0.0
        %911 = vmatprep.subr.mxu0 0.0
        %912 = vmatpush2.msra.mxu0 0.0
        %913 = vmatprep.subr.mxu0 0.0
        %914 = vmatpush2.msra.mxu0 0.0
        %915 = vmatprep.subr.mxu0 0.0
        %916 = vmatpush2.msra.mxu0 0.0
        %917 = vmatprep.subr.mxu0 0.0
        %918 = vmatpush2.msra.mxu0 0.0
        %919 = vmatprep.subr.mxu0 0.0
        %920 = vmatpush2.msra.mxu0 0.0
        %921 = vmatprep.subr.mxu0 0.0
        %922 = vmatpush2.msra.mxu0 0.0
        %923 = vmatprep.subr.mxu0 0.0
        %924 = vmatpush2.msra.mxu0 0.0
        %925 = vmatprep.subr.mxu0 0.0
        %926 = vmatpush2.msra.mxu0 0.0
        %927 = vmatprep.subr.mxu0 0.0
        %928 = vmatpush2.msra.mxu0 0.0
        %929 = vmatprep.subr.mxu0 0.0
        %930 = vmatpush2.msra.mxu0 0.0
        %931 = vmatprep.subr.mxu0 0.0
        %932 = vmatpush2.msra.mxu0 0.0
        %933 = vmatprep.subr.mxu0 0.0
        %934 = vmatpush2.msra.mxu0 0.0
        %935 = vmatprep.subr.mxu0 0.0
        %936 = vmatpush2.msra.mxu0 0.0
        %937 = vmatprep.subr.mxu0 0.0
        %938 = vmatpush2.msra.mxu0 0.0
        %939 = vmatprep.mubr.f32.mxu0 0.0
        %940 = vmatmul.mubr.f32.gmra.mxu0 %v462
        %v941 = vpop.f32.mrf.mxu0
        %v942 = vadd.f32 %v874, %v941
        %v943 = vpop.f32.mrf.mxu0
        %944 = vmatprep.mubr.f32.mxu0 0.0
        %945 = vmatmul.mubr.f32.gmra.mxu0 %v465
        %v946 = vpop.f32.mrf.mxu0
        %v947 = vadd.f32 %v874, %v946
        %v948 = vpop.f32.mrf.mxu0
        %949 = vdwg.mxu0
        %v950 = vsel %vm344, %v942, 0.0
        %951 = vadd.xlane.f32.xlu0 %v950
        %v952 = vpop.xlane.xlu0 %951
        %v953 = vsel %vm344, %v947, 0.0
        %954 = vadd.xlane.f32.xlu0 %v953
        %v955 = vpop.xlane.xlu0 %954
        %v956 = vmul.f32 %v952, %v548
        %v957 = vmul.f32 %v955, %v548
        %v958 = vsub.f32 %v942, %v956
        %v959 = vsub.f32 %v947, %v957
        %v960 = vmul.f32 %v958, %v958
        %v961 = vmul.f32 %v959, %v959
        %v962 = vsel %vm344, %v960, 0.0
        %963 = vadd.xlane.f32.xlu0 %v962
        %v964 = vpop.xlane.xlu0 %963
        %v965 = vsel %vm344, %v961, 0.0
        %966 = vadd.xlane.f32.xlu0 %v965
        %v967 = vpop.xlane.xlu0 %966
        %v968 = vmul.f32 %v964, %v548
        %v969 = vmul.f32 %v967, %v548
        %v970 = vadd.f32 %v968, 1e-05
        %v971 = vadd.f32 %v969, 1e-05
        %v972 = vrsqrt.pop %v970
        %v973 = vrsqrt.pop %v971
        %v974 = vmul.f32 %v958, %v972
        %v975 = vmul.f32 %v959, %v973
        %v976 = vlaneseq
        %v977 = vshrl.u32 %v976, 7
        %v978 = vsub.s32 0, %v977
        %v979 = vrot.slane %v759, %v978
        %v980 = vmul.f32 %v974, %v979
        %v981 = vmul.f32 %v975, %v979
        %v982 = vlaneseq
        %v983 = vshrl.u32 %v982, 7
        %v984 = vsub.s32 1, %v983
        %v985 = vrot.slane %v759, %v984
        %v986 = vadd.f32 %v980, %v985
        %v987 = vadd.f32 %v981, %v985
        %v988 = vmax.f32 %v986, 0.0
        %v989 = vmax.f32 %v987, 0.0
        %v990 = vlaneseq
        %v991 = vshrl.u32 %v990, 7
        %v992 = vsub.s32 0, %v991
        %v993 = vrot.slane %v757, %v992
        %v995 = vsel %vm344, %v988, 0
        %v998 = vsel %vm344, %v989, 0
        %1000 = vmatprep.subr.mxu0 0.0
        %1001 = vmatpush1.msra.mxu0 0.0
        %1002 = vmatprep.subr.mxu0 0.0
        %1003 = vmatpush1.msra.mxu0 0.0
        %1004 = vmatprep.subr.mxu0 0.0
        %1005 = vmatpush1.msra.mxu0 0.0
        %1006 = vmatprep.subr.mxu0 0.0
        %1007 = vmatpush1.msra.mxu0 0.0
        %1008 = vmatprep.subr.mxu0 0.0
        %1009 = vmatpush1.msra.mxu0 0.0
        %1010 = vmatprep.subr.mxu0 0.0
        %1011 = vmatpush1.msra.mxu0 0.0
        %1012 = vmatprep.subr.mxu0 0.0
        %1013 = vmatpush1.msra.mxu0 0.0
        %1014 = vmatprep.subr.mxu0 0.0
        %1015 = vmatpush1.msra.mxu0 0.0
        %1016 = vmatprep.subr.mxu0 0.0
        %1017 = vmatpush1.msra.mxu0 0.0
        %1018 = vmatprep.subr.mxu0 0.0
        %1019 = vmatpush1.msra.mxu0 0.0
        %1020 = vmatprep.subr.mxu0 0.0
        %1021 = vmatpush1.msra.mxu0 0.0
        %1022 = vmatprep.subr.mxu0 0.0
        %1023 = vmatpush1.msra.mxu0 0.0
        %1024 = vmatprep.subr.mxu0 0.0
        %1025 = vmatpush1.msra.mxu0 %v756
        %1026 = vmatprep.subr.mxu0 0.0
        %1027 = vmatpush1.msra.mxu0 %v755
        %1028 = vmatprep.subr.mxu0 0.0
        %1029 = vmatpush1.msra.mxu0 %v754
        %1030 = vmatprep.subr.mxu0 0.0
        %1031 = vmatpush1.msra.mxu0 %v753
        %1032 = vmatprep.subr.mxu0 0.0
        %1033 = vmatpush2.msra.mxu0 0.0
        %1034 = vmatprep.subr.mxu0 0.0
        %1035 = vmatpush2.msra.mxu0 0.0
        %1036 = vmatprep.subr.mxu0 0.0
        %1037 = vmatpush2.msra.mxu0 0.0
        %1038 = vmatprep.subr.mxu0 0.0
        %1039 = vmatpush2.msra.mxu0 0.0
        %1040 = vmatprep.subr.mxu0 0.0
        %1041 = vmatpush2.msra.mxu0 0.0
        %1042 = vmatprep.subr.mxu0 0.0
        %1043 = vmatpush2.msra.mxu0 0.0
        %1044 = vmatprep.subr.mxu0 0.0
        %1045 = vmatpush2.msra.mxu0 0.0
        %1046 = vmatprep.subr.mxu0 0.0
        %1047 = vmatpush2.msra.mxu0 0.0
        %1048 = vmatprep.subr.mxu0 0.0
        %1049 = vmatpush2.msra.mxu0 0.0
        %1050 = vmatprep.subr.mxu0 0.0
        %1051 = vmatpush2.msra.mxu0 0.0
        %1052 = vmatprep.subr.mxu0 0.0
        %1053 = vmatpush2.msra.mxu0 0.0
        %1054 = vmatprep.subr.mxu0 0.0
        %1055 = vmatpush2.msra.mxu0 0.0
        %1056 = vmatprep.subr.mxu0 0.0
        %1057 = vmatpush2.msra.mxu0 0.0
        %1058 = vmatprep.subr.mxu0 0.0
        %1059 = vmatpush2.msra.mxu0 0.0
        %1060 = vmatprep.subr.mxu0 0.0
        %1061 = vmatpush2.msra.mxu0 0.0
        %1062 = vmatprep.subr.mxu0 0.0
        %1063 = vmatpush2.msra.mxu0 0.0
        %1064 = vmatprep.mubr.f32.mxu0 0.0
        %1065 = vmatmul.mubr.f32.gmra.mxu0 %v995
        %v1066 = vpop.f32.mrf.mxu0
        %v1067 = vadd.f32 %v993, %v1066
        %v1068 = vpop.f32.mrf.mxu0
        %1069 = vmatprep.mubr.f32.mxu0 0.0
        %1070 = vmatmul.mubr.f32.gmra.mxu0 %v998
        %v1071 = vpop.f32.mrf.mxu0
        %v1072 = vadd.f32 %v993, %v1071
        %v1073 = vpop.f32.mrf.mxu0
        %1074 = vdwg.mxu0
        %v1075 = vsel %vm344, %v1067, 0.0
        %1076 = vadd.xlane.f32.xlu0 %v1075
        %v1077 = vpop.xlane.xlu0 %1076
        %v1078 = vsel %vm344, %v1072, 0.0
        %1079 = vadd.xlane.f32.xlu0 %v1078
        %v1080 = vpop.xlane.xlu0 %1079
        %v1081 = vmul.f32 %v1077, %v548
        %v1082 = vmul.f32 %v1080, %v548
        %v1083 = vsub.f32 %v1067, %v1081
        %v1084 = vsub.f32 %v1072, %v1082
        %v1085 = vmul.f32 %v1083, %v1083
        %v1086 = vmul.f32 %v1084, %v1084
        %v1087 = vsel %vm344, %v1085, 0.0
        %1088 = vadd.xlane.f32.xlu0 %v1087
        %v1089 = vpop.xlane.xlu0 %1088
        %v1090 = vsel %vm344, %v1086, 0.0
        %1091 = vadd.xlane.f32.xlu0 %v1090
        %v1092 = vpop.xlane.xlu0 %1091
        %v1093 = vmul.f32 %v1089, %v548
        %v1094 = vmul.f32 %v1092, %v548
        %v1095 = vadd.f32 %v1093, 1e-05
        %v1096 = vadd.f32 %v1094, 1e-05
        %v1097 = vrsqrt.pop %v1095
        %v1098 = vrsqrt.pop %v1096
        %v1099 = vmul.f32 %v1083, %v1097
        %v1100 = vmul.f32 %v1084, %v1098
        %v1101 = vmul.f32 %v1099, %v979
        %v1102 = vmul.f32 %v1100, %v979
        %v1103 = vadd.f32 %v1101, %v985
        %v1104 = vadd.f32 %v1102, %v985
        %v1105 = vmax.f32 %v1103, 0.0
        %v1106 = vmax.f32 %v1104, 0.0
        %v1107 = vadd.f32 %v1105, %v740
        %v1108 = vadd.f32 %v1106, %v741
        %v1109 = vmax.f32 %v1107, 0.0
        %v1110 = vmax.f32 %v1108, 0.0
        %v1111 = vsel %vm344, %v1109, 0.0
        %1112 = vadd.xlane.f32.xlu0 %v1111
        %v1113 = vpop.xlane.xlu0 %1112
        %v1114 = vsel %vm344, %v1110, 0.0
        %1115 = vadd.xlane.f32.xlu0 %v1114
        %v1116 = vpop.xlane.xlu0 %1115
        %v1117 = vmul.f32 %v1113, %v548
        %v1118 = vmul.f32 %v1116, %v548
        %v1119 = vsub.f32 %v1109, %v1117
        %v1120 = vsub.f32 %v1110, %v1118
        %v1121 = vmul.f32 %v1119, %v1119
        %v1122 = vmul.f32 %v1120, %v1120
        %v1123 = vsel %vm344, %v1121, 0.0
        %1124 = vadd.xlane.f32.xlu0 %v1123
        %v1125 = vpop.xlane.xlu0 %1124
        %v1126 = vsel %vm344, %v1122, 0.0
        %1127 = vadd.xlane.f32.xlu0 %v1126
        %v1128 = vpop.xlane.xlu0 %1127
        %v1129 = vmul.f32 %v1125, %v548
        %v1130 = vmul.f32 %v1128, %v548
        %v1131 = vadd.f32 %v1129, 1e-05
        %v1132 = vadd.f32 %v1130, 1e-05
        %v1133 = vrsqrt.pop %v1131
        %v1134 = vrsqrt.pop %v1132
        %v1135 = vmul.f32 %v1119, %v1133
        %v1136 = vmul.f32 %v1120, %v1134
        %v1137 = vmul.f32 %v1135, %v733
        %v1138 = vmul.f32 %v1136, %v733
        %v1139 = vadd.f32 %v1137, %v739
        %v1140 = vadd.f32 %v1138, %v739
        %1141 = vst.msk [vmem:[%s313] sm:$0xff] %vm344, %v1139
        %1142 = vst.msk [vmem:[%s313 + $0x8] sm:$0xff] %vm344, %v1140
        %s1143 = sand.u32 %s208, 1
        %s1144 = scalar_lea.sflag [#allocation3], %s1143
        %s1145 = sand.u32 %s208, 1
        %s1146 = smul.addr %s1145, 16
        %s1147 = scalar_lea.vmem [#allocation2], %s1146
        // Predicated region
        $region53: #{gcn_module_forward.1} parent=51 // pred_check
          %p1148 = pneg %p218
        $region54: #{gcn_module_forward.1} parent=51 // pred_check_branch
          %1150 = sbr.rel (%p1148) target = $region56
        $region55: #{gcn_module_forward.1} parent=51 // pred_region
          %s1152 = ssub.s32 256, 256
          %1153 = vsyncadd %s1144, %s1152
          %s1154 = smul.addr %s22, 2
          %s1155 = smul.addr %s1154, 128
          %s1156 = scalar_lea.hbm %s8, %s1155
          %s1157 = sshll.u32 %s1147, 4
          %s1158 = int_to_ptr.vmem [resolvable:$true] %s1157
          %1163 = dma.vmem_to_hbm [thread:$0]  %s1158, 256, %s1156, %s1144, 128, 128, 8
        $region56: #{gcn_module_forward.1} parent=51 // pred_fallthru
          _
      $region52: #{gcn_module_forward.1} parent=5 // pred_fallthru
        _
      %p1164 = scmp.le.s32.totalorder 2, %s17
      // Predicated region
      $region57: #{gcn_module_forward.1} parent=5 // pred_check
        %p1165 = pneg %p1164
      $region58: #{gcn_module_forward.1} parent=5 // pred_check_branch
        %1167 = sbr.rel (%p1165) target = $region60
      $region59: #{gcn_module_forward.1} parent=5 // pred_region
        %s1168 = ssub.s32 %s17, 2
        // Predicated region
        $region61: #{gcn_module_forward.1} parent=59 // pred_check
          %p1169 = pneg %p224
        $region62: #{gcn_module_forward.1} parent=59 // pred_check_branch
          %1171 = sbr.rel (%p1169) target = $region64
        $region63: #{gcn_module_forward.1} parent=59 // pred_region
          %s1172 = sand.u32 %s209, 1
          %s1173 = scalar_lea.sflag [#allocation3], %s1172
          %s1174 = sand.u32 %s209, 1
          %s1175 = smul.addr %s1174, 16
          %s1176 = scalar_lea.vmem [#allocation2], %s1175
          %1177 = dma.done %s1173, 256
        $region64: #{gcn_module_forward.1} parent=59 // pred_fallthru
          _
      $region60: #{gcn_module_forward.1} parent=5 // pred_fallthru
        _
    $region6: #{gcn_module_forward.1} parent=1 // loop_footer
      %s21 = sadd.s32 1, %s17
    $region7: #{gcn_module_forward.1} parent=1 // loop_footer_branch
      %16 = sbr.rel target = $region3
    $region8: #{gcn_module_forward.1} parent=1 // loop_exit
      _
    %1178 = vsyncpa [#allocation3], 1
    %s1179 = scalar_lea.sflag [#allocation3], 1
    %1180 = vsyncpa %s1179, 1

</llo_original>
